<compile_context>
chip_gen: v7x
topology: tpu7x:2x2x1
jax: 0.10.0
libtpu: 0.0.40
codegen_flags: <defaults>
</compile_context>

<pallas_src>
import functools
import math

import jax
import jax.numpy as jnp
from jax.experimental import pallas as pl
from jax.experimental.pallas import tpu as pltpu


def _layer_norm(x, gamma, beta, eps=1e-5):
    # x: (S, D), gamma/beta: (1, D) -- biased variance like torch.nn.LayerNorm.
    # Single-pass stats: E[x^2] - mu^2 (avoids the (x - mu) pre-reduce pass).
    mu = jnp.mean(x, axis=-1, keepdims=True)
    ms = jnp.mean(x * x, axis=-1, keepdims=True)
    var = ms - mu * mu
    return (x - mu) * jax.lax.rsqrt(var + eps) * gamma + beta


def _encoder_layer_kernel(n_heads,
                          x_ref,
                          ln1_g, ln1_b,
                          wqkv, bqkv, wo, bo,
                          ln2_g, ln2_b,
                          w1, b1, w2, b2,
                          out_ref):
    x = x_ref[...].astype(jnp.float32)             # (S, D)
    S, D = x.shape
    H = n_heads
    Dh = D // H

    # ---- sub-layer 1: pre-LN multi-head self-attention + residual ----
    xn = _layer_norm(x, ln1_g[...], ln1_b[...])

    # Fused QKV projection: one big MXU matmul, bf16 operands, f32 accumulate.
    # (1/sqrt(Dh) is already folded into the Q columns of wqkv/bqkv.)
    qkv = jnp.dot(xn.astype(jnp.bfloat16), wqkv[...],
                  preferred_element_type=jnp.float32) + bqkv[...]   # (S, 3D) f32
    q = qkv[:, :D]
    k = qkv[:, D:2 * D]
    v = qkv[:, 2 * D:]

    def to_heads(t):  # (S, D) -> (H, S, Dh), bf16 (static lane slices)
        t = t.astype(jnp.bfloat16)
        return jnp.stack([t[:, h * Dh:(h + 1) * Dh] for h in range(H)], axis=0)

    qh = to_heads(q)
    kh = to_heads(k)
    vh = to_heads(v)

    # Batched per-head attention (single dot_general per stage).
    s = jnp.einsum('hqd,hkd->hqk', qh, kh,
                   preferred_element_type=jnp.float32)               # (H, S, S) f32
    s = s - jnp.max(s, axis=-1, keepdims=True)
    p = jnp.exp(s)
    p = p * pl.reciprocal(jnp.sum(p, axis=-1, keepdims=True), approx=True)
    o = jnp.einsum('hqk,hkd->hqd', p.astype(jnp.bfloat16), vh,
                   preferred_element_type=jnp.float32)                # (H, S, Dh) f32

    # Concatenate heads, then a single dense output projection.
    o_cat = jnp.concatenate([o[h] for h in range(H)], axis=-1)        # (S, D)
    attn = jnp.dot(o_cat.astype(jnp.bfloat16), wo[...],
                   preferred_element_type=jnp.float32) + bo[...]
    x1 = attn + x                                   # dropout == identity (eval)

    # ---- sub-layer 2: pre-LN position-wise feed-forward + residual ----
    xn2 = _layer_norm(x1, ln2_g[...], ln2_b[...])
    hdn = jnp.dot(xn2.astype(jnp.bfloat16), w1[...],
                  preferred_element_type=jnp.float32) + b1[...]
    hdn = jnp.maximum(hdn, 0.0)                     # ReLU
    ffn = jnp.dot(hdn.astype(jnp.bfloat16), w2[...],
                  preferred_element_type=jnp.float32) + b2[...]
    out = ffn + x1                                  # dropout == identity (eval)

    out_ref[...] = out.astype(out_ref.dtype)


def encoder_layer(x, params, n_heads):
    """One EncoderLayer forward.  x: (B, S, D) float32."""
    B, S, D = x.shape
    dff = params["w1"].shape[1]
    assert D % n_heads == 0
    Dh = D // n_heads
    q_scale = 1.0 / math.sqrt(Dh)

    wdt = jnp.bfloat16
    # One-time parameter prep in the wrapper:
    #  * fuse QKV weights/biases (halves weight HBM bytes vs 3 f32 mats + 1 matmul)
    #  * fold the attention scale into the Q projection (zero in-kernel cost)
    wqkv = jnp.concatenate(
        [params["wq"] * q_scale, params["wk"], params["wv"]], axis=1).astype(wdt)
    bqkv = jnp.concatenate(
        [params["bq"] * q_scale, params["bk"], params["bv"]], axis=1)
    wo = params["wo"].astype(wdt)
    w1 = params["w1"].astype(wdt)
    w2 = params["w2"].astype(wdt)

    def rep(shape):
        # Replicated (constant block index) parameter spec: DMA'd once.
        return pl.BlockSpec(shape, lambda b: (0,) * len(shape))

    in_specs = [
        pl.BlockSpec((pl.Squeezed(), S, D), lambda b: (b, 0, 0)),   # x -> kernel sees (S, D)
        rep((1, D)), rep((1, D)),                                   # ln1 gamma/beta
        rep((D, 3 * D)), rep((1, 3 * D)),                           # Wqkv, bqkv
        rep((D, D)), rep((1, D)),                                   # Wo, bo
        rep((1, D)), rep((1, D)),                                   # ln2 gamma/beta
        rep((D, dff)), rep((1, dff)),                               # W1, b1
        rep((dff, D)), rep((1, D)),                                 # W2, b2
    ]

    return pl.pallas_call(
        functools.partial(_encoder_layer_kernel, n_heads),
        out_shape=jax.ShapeDtypeStruct((B, S, D), x.dtype),
        grid=(B,),
        in_specs=in_specs,
        out_specs=pl.BlockSpec((pl.Squeezed(), S, D), lambda b: (b, 0, 0)),
        compiler_params=pltpu.CompilerParams(
            dimension_semantics=("parallel",),
            vmem_limit_bytes=64 << 20),
    )(x,
      params["ln1_g"], params["ln1_b"],
      wqkv, bqkv, wo, params["bo"],
      params["ln2_g"], params["ln2_b"],
      w1, params["b1"], w2, params["b2"])


def init_params(key, d_model, dff):
    """Deterministic synthetic parameter init (torch-equivalent shapes, (in,out) convention)."""
    key, *ks = jax.random.split(key, 7)
    return {
        "ln1_g": jnp.ones((1, d_model), jnp.float32),
        "ln1_b": jnp.zeros((1, d_model), jnp.float32),
        "wq": 0.02 * jax.random.normal(ks[0], (d_model, d_model), jnp.float32),
        "bq": jnp.zeros((1, d_model), jnp.float32),
        "wk": 0.02 * jax.random.normal(ks[1], (d_model, d_model), jnp.float32),
        "bk": jnp.zeros((1, d_model), jnp.float32),
        "wv": 0.02 * jax.random.normal(ks[2], (d_model, d_model), jnp.float32),
        "bv": jnp.zeros((1, d_model), jnp.float32),
        "wo": 0.02 * jax.random.normal(ks[3], (d_model, d_model), jnp.float32),
        "bo": jnp.zeros((1, d_model), jnp.float32),
        "ln2_g": jnp.ones((1, d_model), jnp.float32),
        "ln2_b": jnp.zeros((1, d_model), jnp.float32),
        "w1": 0.02 * jax.random.normal(ks[4], (d_model, dff), jnp.float32),
        "b1": jnp.zeros((1, dff), jnp.float32),
        "w2": 0.02 * jax.random.normal(ks[5], (dff, d_model), jnp.float32),
        "b2": jnp.zeros((1, d_model), jnp.float32),
    }


def _reference(x, p, n_heads):
    """Pure-JAX f32 reference (matches the PyTorch EncoderLayer forward, eval mode)."""
    def ln(v, g, b, eps=1e-5):
        mu = v.mean(-1, keepdims=True)
        var = ((v - mu) ** 2).mean(-1, keepdims=True)
        return (v - mu) / jnp.sqrt(var + eps) * g + b

    B, S, D = x.shape
    Dh = D // n_heads
    res = x
    xn = ln(x, p["ln1_g"], p["ln1_b"])
    q = xn @ p["wq"] + p["bq"]
    k = xn @ p["wk"] + p["bk"]
    v = xn @ p["wv"] + p["bv"]
    q = q.reshape(B, S, n_heads, Dh).transpose(0, 2, 1, 3)
    k = k.reshape(B, S, n_heads, Dh).transpose(0, 2, 1, 3)
    v = v.reshape(B, S, n_heads, Dh).transpose(0, 2, 1, 3)
    s = jnp.einsum("bhqd,bhkd->bhqk", q, k) / math.sqrt(Dh)
    a = jax.nn.softmax(s, axis=-1)
    o = jnp.einsum("bhqk,bhkd->bhqd", a, v).transpose(0, 2, 1, 3).reshape(B, S, D)
    x1 = o @ p["wo"] + p["bo"] + res

    res2 = x1
    xn2 = ln(x1, p["ln2_g"], p["ln2_b"])
    h = jax.nn.relu(xn2 @ p["w1"] + p["b1"])
    return h @ p["w2"] + p["b2"] + res2


if __name__ == "__main__":
    # Small shapes consistent with the module; d_model chosen lane-dense (128).
    batch, seq, d_model, dff, n_heads = 2, 16, 128, 256, 4

    key = jax.random.PRNGKey(0)
    key, xk = jax.random.split(key)
    x = jax.random.normal(xk, (batch, seq, d_model), jnp.float32)
    params = init_params(key, d_model, dff)

    out = encoder_layer(x, params, n_heads)
    out = jax.block_until_ready(out)

    ref = _reference(x, params, n_heads)
    assert out.shape == (batch, seq, d_model)
    # bf16 matmul operands with f32 accumulation -> relaxed tolerance vs f32 ref.
    err = float(jnp.max(jnp.abs(out - ref)))
    assert jnp.allclose(out, ref, atol=2e-2, rtol=2e-2), err

    print("KERNEL_OK")
</pallas_src>

<mosaic_0001>
module attributes {stable_mosaic.version = 11 : i64} {
  func.func @_encoder_layer_kernel(%arg0: i32, %arg1: memref<1x16x128xf32, #tpu.memory_space<vmem>>, %arg2: memref<1x128xf32, #tpu.memory_space<vmem>>, %arg3: memref<1x128xf32, #tpu.memory_space<vmem>>, %arg4: memref<128x384xbf16, #tpu.memory_space<vmem>>, %arg5: memref<1x384xf32, #tpu.memory_space<vmem>>, %arg6: memref<128x128xbf16, #tpu.memory_space<vmem>>, %arg7: memref<1x128xf32, #tpu.memory_space<vmem>>, %arg8: memref<1x128xf32, #tpu.memory_space<vmem>>, %arg9: memref<1x128xf32, #tpu.memory_space<vmem>>, %arg10: memref<128x256xbf16, #tpu.memory_space<vmem>>, %arg11: memref<1x256xf32, #tpu.memory_space<vmem>>, %arg12: memref<256x128xbf16, #tpu.memory_space<vmem>>, %arg13: memref<1x128xf32, #tpu.memory_space<vmem>>, %arg14: memref<1x16x128xf32, #tpu.memory_space<vmem>>) attributes {dimension_semantics = [#tpu.dimension_semantics<parallel>], iteration_bounds = array<i64: 2>, scalar_prefetch = 0 : i64, scratch_operands = 0 : i64, tpu.core_type = #tpu.core_type<tc>, window_params = [{transform_indices = @transform_0, window_bounds = array<i64: 1, 16, 128>}, {pipeline_mode = #tpu.pipeline_mode<synchronous>, transform_indices = @transform_1, window_bounds = array<i64: 1, 128>}, {pipeline_mode = #tpu.pipeline_mode<synchronous>, transform_indices = @transform_2, window_bounds = array<i64: 1, 128>}, {pipeline_mode = #tpu.pipeline_mode<synchronous>, transform_indices = @transform_3, window_bounds = array<i64: 128, 384>}, {pipeline_mode = #tpu.pipeline_mode<synchronous>, transform_indices = @transform_4, window_bounds = array<i64: 1, 384>}, {pipeline_mode = #tpu.pipeline_mode<synchronous>, transform_indices = @transform_5, window_bounds = array<i64: 128, 128>}, {pipeline_mode = #tpu.pipeline_mode<synchronous>, transform_indices = @transform_6, window_bounds = array<i64: 1, 128>}, {pipeline_mode = #tpu.pipeline_mode<synchronous>, transform_indices = @transform_7, window_bounds = array<i64: 1, 128>}, {pipeline_mode = #tpu.pipeline_mode<synchronous>, transform_indices = @transform_8, window_bounds = array<i64: 1, 128>}, {pipeline_mode = #tpu.pipeline_mode<synchronous>, transform_indices = @transform_9, window_bounds = array<i64: 128, 256>}, {pipeline_mode = #tpu.pipeline_mode<synchronous>, transform_indices = @transform_10, window_bounds = array<i64: 1, 256>}, {pipeline_mode = #tpu.pipeline_mode<synchronous>, transform_indices = @transform_11, window_bounds = array<i64: 256, 128>}, {pipeline_mode = #tpu.pipeline_mode<synchronous>, transform_indices = @transform_12, window_bounds = array<i64: 1, 128>}, {transform_indices = @transform_13, window_bounds = array<i64: 1, 16, 128>}]} {
    %c0 = arith.constant 0 : index
    %c0_0 = arith.constant 0 : index
    %c0_1 = arith.constant 0 : index
    %0 = vector.load %arg1[%c0, %c0_0, %c0_1] : memref<1x16x128xf32, #tpu.memory_space<vmem>>, vector<1x16x128xf32>
    %1 = vector.shape_cast %0 : vector<1x16x128xf32> to vector<16x128xf32>
    %c0_2 = arith.constant 0 : index
    %c0_3 = arith.constant 0 : index
    %2 = vector.load %arg2[%c0_2, %c0_3] : memref<1x128xf32, #tpu.memory_space<vmem>>, vector<1x128xf32>
    %c0_4 = arith.constant 0 : index
    %c0_5 = arith.constant 0 : index
    %3 = vector.load %arg3[%c0_4, %c0_5] : memref<1x128xf32, #tpu.memory_space<vmem>>, vector<1x128xf32>
    %cst = arith.constant dense<0.000000e+00> : vector<16xf32>
    %4 = vector.multi_reduction <add>, %1, %cst [1] : vector<16x128xf32> to vector<16xf32>
    %5 = vector.shape_cast %4 : vector<16xf32> to vector<16x1xf32>
    %cst_6 = arith.constant 1.280000e+02 : f32
    %6 = vector.broadcast %cst_6 : f32 to vector<16x1xf32>
    %7 = arith.divf %5, %6 : vector<16x1xf32>
    %8 = arith.mulf %1, %1 : vector<16x128xf32>
    %cst_7 = arith.constant dense<0.000000e+00> : vector<16xf32>
    %9 = vector.multi_reduction <add>, %8, %cst_7 [1] : vector<16x128xf32> to vector<16xf32>
    %10 = vector.shape_cast %9 : vector<16xf32> to vector<16x1xf32>
    %cst_8 = arith.constant 1.280000e+02 : f32
    %11 = vector.broadcast %cst_8 : f32 to vector<16x1xf32>
    %12 = arith.divf %10, %11 : vector<16x1xf32>
    %13 = arith.mulf %7, %7 : vector<16x1xf32>
    %14 = arith.subf %12, %13 : vector<16x1xf32>
    %15 = vector.broadcast %7 : vector<16x1xf32> to vector<16x128xf32>
    %16 = arith.subf %1, %15 : vector<16x128xf32>
    %cst_9 = arith.constant 9.99999974E-6 : f32
    %17 = vector.broadcast %cst_9 : f32 to vector<16x1xf32>
    %18 = arith.addf %14, %17 : vector<16x1xf32>
    %19 = math.rsqrt %18 : vector<16x1xf32>
    %20 = vector.broadcast %19 : vector<16x1xf32> to vector<16x128xf32>
    %21 = arith.mulf %16, %20 : vector<16x128xf32>
    %22 = vector.broadcast %2 : vector<1x128xf32> to vector<16x128xf32>
    %23 = arith.mulf %21, %22 : vector<16x128xf32>
    %24 = vector.broadcast %3 : vector<1x128xf32> to vector<16x128xf32>
    %25 = arith.addf %23, %24 : vector<16x128xf32>
    %26 = arith.truncf %25 : vector<16x128xf32> to vector<16x128xbf16>
    %c0_10 = arith.constant 0 : index
    %c0_11 = arith.constant 0 : index
    %27 = vector.load %arg4[%c0_10, %c0_11] : memref<128x384xbf16, #tpu.memory_space<vmem>>, vector<128x384xbf16>
    %cst_12 = arith.constant dense<0.000000e+00> : vector<16x384xf32>
    %28 = tpu.matmul %26, %27, %cst_12 {dimension_numbers = #tpu.dot_dimension_numbers<[1], [0], [0], [1], [0, 0, 1, 1], [], []>} : vector<16x128xbf16>, vector<128x384xbf16>, vector<16x384xf32> -> vector<16x384xf32>
    %c0_13 = arith.constant 0 : index
    %c0_14 = arith.constant 0 : index
    %29 = vector.load %arg5[%c0_13, %c0_14] : memref<1x384xf32, #tpu.memory_space<vmem>>, vector<1x384xf32>
    %30 = vector.broadcast %29 : vector<1x384xf32> to vector<16x384xf32>
    %31 = arith.addf %28, %30 : vector<16x384xf32>
    %32 = vector.extract_strided_slice %31 {offsets = [0, 0], sizes = [16, 128], strides = [1, 1]} : vector<16x384xf32> to vector<16x128xf32>
    %33 = vector.extract_strided_slice %31 {offsets = [0, 128], sizes = [16, 128], strides = [1, 1]} : vector<16x384xf32> to vector<16x128xf32>
    %34 = vector.extract_strided_slice %31 {offsets = [0, 256], sizes = [16, 128], strides = [1, 1]} : vector<16x384xf32> to vector<16x128xf32>
    %35 = arith.truncf %32 : vector<16x128xf32> to vector<16x128xbf16>
    %36 = vector.extract_strided_slice %35 {offsets = [0, 0], sizes = [16, 32], strides = [1, 1]} : vector<16x128xbf16> to vector<16x32xbf16>
    %37 = vector.extract_strided_slice %35 {offsets = [0, 32], sizes = [16, 32], strides = [1, 1]} : vector<16x128xbf16> to vector<16x32xbf16>
    %38 = vector.extract_strided_slice %35 {offsets = [0, 64], sizes = [16, 32], strides = [1, 1]} : vector<16x128xbf16> to vector<16x32xbf16>
    %39 = vector.extract_strided_slice %35 {offsets = [0, 96], sizes = [16, 32], strides = [1, 1]} : vector<16x128xbf16> to vector<16x32xbf16>
    %40 = vector.shape_cast %36 : vector<16x32xbf16> to vector<1x16x32xbf16>
    %41 = vector.shape_cast %37 : vector<16x32xbf16> to vector<1x16x32xbf16>
    %42 = vector.shape_cast %38 : vector<16x32xbf16> to vector<1x16x32xbf16>
    %43 = vector.shape_cast %39 : vector<16x32xbf16> to vector<1x16x32xbf16>
    %44 = tpu.concatenate %40, %41, %42, %43 in 0 : vector<1x16x32xbf16>, vector<1x16x32xbf16>, vector<1x16x32xbf16>, vector<1x16x32xbf16> -> vector<4x16x32xbf16>
    %45 = arith.truncf %33 : vector<16x128xf32> to vector<16x128xbf16>
    %46 = vector.extract_strided_slice %45 {offsets = [0, 0], sizes = [16, 32], strides = [1, 1]} : vector<16x128xbf16> to vector<16x32xbf16>
    %47 = vector.extract_strided_slice %45 {offsets = [0, 32], sizes = [16, 32], strides = [1, 1]} : vector<16x128xbf16> to vector<16x32xbf16>
    %48 = vector.extract_strided_slice %45 {offsets = [0, 64], sizes = [16, 32], strides = [1, 1]} : vector<16x128xbf16> to vector<16x32xbf16>
    %49 = vector.extract_strided_slice %45 {offsets = [0, 96], sizes = [16, 32], strides = [1, 1]} : vector<16x128xbf16> to vector<16x32xbf16>
    %50 = vector.shape_cast %46 : vector<16x32xbf16> to vector<1x16x32xbf16>
    %51 = vector.shape_cast %47 : vector<16x32xbf16> to vector<1x16x32xbf16>
    %52 = vector.shape_cast %48 : vector<16x32xbf16> to vector<1x16x32xbf16>
    %53 = vector.shape_cast %49 : vector<16x32xbf16> to vector<1x16x32xbf16>
    %54 = tpu.concatenate %50, %51, %52, %53 in 0 : vector<1x16x32xbf16>, vector<1x16x32xbf16>, vector<1x16x32xbf16>, vector<1x16x32xbf16> -> vector<4x16x32xbf16>
    %55 = arith.truncf %34 : vector<16x128xf32> to vector<16x128xbf16>
    %56 = vector.extract_strided_slice %55 {offsets = [0, 0], sizes = [16, 32], strides = [1, 1]} : vector<16x128xbf16> to vector<16x32xbf16>
    %57 = vector.extract_strided_slice %55 {offsets = [0, 32], sizes = [16, 32], strides = [1, 1]} : vector<16x128xbf16> to vector<16x32xbf16>
    %58 = vector.extract_strided_slice %55 {offsets = [0, 64], sizes = [16, 32], strides = [1, 1]} : vector<16x128xbf16> to vector<16x32xbf16>
    %59 = vector.extract_strided_slice %55 {offsets = [0, 96], sizes = [16, 32], strides = [1, 1]} : vector<16x128xbf16> to vector<16x32xbf16>
    %60 = vector.shape_cast %56 : vector<16x32xbf16> to vector<1x16x32xbf16>
    %61 = vector.shape_cast %57 : vector<16x32xbf16> to vector<1x16x32xbf16>
    %62 = vector.shape_cast %58 : vector<16x32xbf16> to vector<1x16x32xbf16>
    %63 = vector.shape_cast %59 : vector<16x32xbf16> to vector<1x16x32xbf16>
    %64 = tpu.concatenate %60, %61, %62, %63 in 0 : vector<1x16x32xbf16>, vector<1x16x32xbf16>, vector<1x16x32xbf16>, vector<1x16x32xbf16> -> vector<4x16x32xbf16>
    "tpu.trace_start"() <{level = 10 : i32, message = "hqd,hkd->hqk"}> : () -> ()
    %cst_15 = arith.constant dense<0.000000e+00> : vector<4x16x16xf32>
    %65 = tpu.matmul %44, %54, %cst_15 {dimension_numbers = #tpu.dot_dimension_numbers<[2], [2], [1], [1], [0, 0, 0, 1, 1, 1], [0], [0]>} : vector<4x16x32xbf16>, vector<4x16x32xbf16>, vector<4x16x16xf32> -> vector<4x16x16xf32>
    "tpu.trace_stop"() : () -> ()
    %cst_16 = arith.constant dense<0xFF800000> : vector<4x16xf32>
    %66 = vector.multi_reduction <maximumf>, %65, %cst_16 [2] : vector<4x16x16xf32> to vector<4x16xf32>
    %67 = vector.shape_cast %66 : vector<4x16xf32> to vector<4x16x1xf32>
    %68 = vector.broadcast %67 : vector<4x16x1xf32> to vector<4x16x16xf32>
    %69 = arith.subf %65, %68 : vector<4x16x16xf32>
    %70 = math.exp %69 : vector<4x16x16xf32>
    %cst_17 = arith.constant dense<0.000000e+00> : vector<4x16xf32>
    %71 = vector.multi_reduction <add>, %70, %cst_17 [2] : vector<4x16x16xf32> to vector<4x16xf32>
    %72 = vector.shape_cast %71 : vector<4x16xf32> to vector<4x16x1xf32>
    %73 = tpu.reciprocal %72 {approx = true} : vector<4x16x1xf32> -> vector<4x16x1xf32>
    %74 = vector.broadcast %73 : vector<4x16x1xf32> to vector<4x16x16xf32>
    %75 = arith.mulf %70, %74 : vector<4x16x16xf32>
    %76 = arith.truncf %75 : vector<4x16x16xf32> to vector<4x16x16xbf16>
    "tpu.trace_start"() <{level = 10 : i32, message = "hqk,hkd->hqd"}> : () -> ()
    %cst_18 = arith.constant dense<0.000000e+00> : vector<4x16x32xf32>
    %77 = tpu.matmul %76, %64, %cst_18 {dimension_numbers = #tpu.dot_dimension_numbers<[2], [1], [1], [2], [0, 0, 0, 1, 1, 2], [0], [0]>} : vector<4x16x16xbf16>, vector<4x16x32xbf16>, vector<4x16x32xf32> -> vector<4x16x32xf32>
    "tpu.trace_stop"() : () -> ()
    %78 = vector.extract_strided_slice %77 {offsets = [0, 0, 0], sizes = [1, 16, 32], strides = [1, 1, 1]} : vector<4x16x32xf32> to vector<1x16x32xf32>
    %79 = vector.shape_cast %78 : vector<1x16x32xf32> to vector<16x32xf32>
    %80 = vector.extract_strided_slice %77 {offsets = [1, 0, 0], sizes = [1, 16, 32], strides = [1, 1, 1]} : vector<4x16x32xf32> to vector<1x16x32xf32>
    %81 = vector.shape_cast %80 : vector<1x16x32xf32> to vector<16x32xf32>
    %82 = vector.extract_strided_slice %77 {offsets = [2, 0, 0], sizes = [1, 16, 32], strides = [1, 1, 1]} : vector<4x16x32xf32> to vector<1x16x32xf32>
    %83 = vector.shape_cast %82 : vector<1x16x32xf32> to vector<16x32xf32>
    %84 = vector.extract_strided_slice %77 {offsets = [3, 0, 0], sizes = [1, 16, 32], strides = [1, 1, 1]} : vector<4x16x32xf32> to vector<1x16x32xf32>
    %85 = vector.shape_cast %84 : vector<1x16x32xf32> to vector<16x32xf32>
    %86 = tpu.concatenate %79, %81, %83, %85 in 1 : vector<16x32xf32>, vector<16x32xf32>, vector<16x32xf32>, vector<16x32xf32> -> vector<16x128xf32>
    %87 = arith.truncf %86 : vector<16x128xf32> to vector<16x128xbf16>
    %c0_19 = arith.constant 0 : index
    %c0_20 = arith.constant 0 : index
    %88 = vector.load %arg6[%c0_19, %c0_20] : memref<128x128xbf16, #tpu.memory_space<vmem>>, vector<128x128xbf16>
    %cst_21 = arith.constant dense<0.000000e+00> : vector<16x128xf32>
    %89 = tpu.matmul %87, %88, %cst_21 {dimension_numbers = #tpu.dot_dimension_numbers<[1], [0], [0], [1], [0, 0, 1, 1], [], []>} : vector<16x128xbf16>, vector<128x128xbf16>, vector<16x128xf32> -> vector<16x128xf32>
    %c0_22 = arith.constant 0 : index
    %c0_23 = arith.constant 0 : index
    %90 = vector.load %arg7[%c0_22, %c0_23] : memref<1x128xf32, #tpu.memory_space<vmem>>, vector<1x128xf32>
    %91 = vector.broadcast %90 : vector<1x128xf32> to vector<16x128xf32>
    %92 = arith.addf %89, %91 : vector<16x128xf32>
    %93 = arith.addf %92, %1 : vector<16x128xf32>
    %c0_24 = arith.constant 0 : index
    %c0_25 = arith.constant 0 : index
    %94 = vector.load %arg8[%c0_24, %c0_25] : memref<1x128xf32, #tpu.memory_space<vmem>>, vector<1x128xf32>
    %c0_26 = arith.constant 0 : index
    %c0_27 = arith.constant 0 : index
    %95 = vector.load %arg9[%c0_26, %c0_27] : memref<1x128xf32, #tpu.memory_space<vmem>>, vector<1x128xf32>
    %cst_28 = arith.constant dense<0.000000e+00> : vector<16xf32>
    %96 = vector.multi_reduction <add>, %93, %cst_28 [1] : vector<16x128xf32> to vector<16xf32>
    %97 = vector.shape_cast %96 : vector<16xf32> to vector<16x1xf32>
    %cst_29 = arith.constant 1.280000e+02 : f32
    %98 = vector.broadcast %cst_29 : f32 to vector<16x1xf32>
    %99 = arith.divf %97, %98 : vector<16x1xf32>
    %100 = arith.mulf %93, %93 : vector<16x128xf32>
    %cst_30 = arith.constant dense<0.000000e+00> : vector<16xf32>
    %101 = vector.multi_reduction <add>, %100, %cst_30 [1] : vector<16x128xf32> to vector<16xf32>
    %102 = vector.shape_cast %101 : vector<16xf32> to vector<16x1xf32>
    %cst_31 = arith.constant 1.280000e+02 : f32
    %103 = vector.broadcast %cst_31 : f32 to vector<16x1xf32>
    %104 = arith.divf %102, %103 : vector<16x1xf32>
    %105 = arith.mulf %99, %99 : vector<16x1xf32>
    %106 = arith.subf %104, %105 : vector<16x1xf32>
    %107 = vector.broadcast %99 : vector<16x1xf32> to vector<16x128xf32>
    %108 = arith.subf %93, %107 : vector<16x128xf32>
    %cst_32 = arith.constant 9.99999974E-6 : f32
    %109 = vector.broadcast %cst_32 : f32 to vector<16x1xf32>
    %110 = arith.addf %106, %109 : vector<16x1xf32>
    %111 = math.rsqrt %110 : vector<16x1xf32>
    %112 = vector.broadcast %111 : vector<16x1xf32> to vector<16x128xf32>
    %113 = arith.mulf %108, %112 : vector<16x128xf32>
    %114 = vector.broadcast %94 : vector<1x128xf32> to vector<16x128xf32>
    %115 = arith.mulf %113, %114 : vector<16x128xf32>
    %116 = vector.broadcast %95 : vector<1x128xf32> to vector<16x128xf32>
    %117 = arith.addf %115, %116 : vector<16x128xf32>
    %118 = arith.truncf %117 : vector<16x128xf32> to vector<16x128xbf16>
    %c0_33 = arith.constant 0 : index
    %c0_34 = arith.constant 0 : index
    %119 = vector.load %arg10[%c0_33, %c0_34] : memref<128x256xbf16, #tpu.memory_space<vmem>>, vector<128x256xbf16>
    %cst_35 = arith.constant dense<0.000000e+00> : vector<16x256xf32>
    %120 = tpu.matmul %118, %119, %cst_35 {dimension_numbers = #tpu.dot_dimension_numbers<[1], [0], [0], [1], [0, 0, 1, 1], [], []>} : vector<16x128xbf16>, vector<128x256xbf16>, vector<16x256xf32> -> vector<16x256xf32>
    %c0_36 = arith.constant 0 : index
    %c0_37 = arith.constant 0 : index
    %121 = vector.load %arg11[%c0_36, %c0_37] : memref<1x256xf32, #tpu.memory_space<vmem>>, vector<1x256xf32>
    %122 = vector.broadcast %121 : vector<1x256xf32> to vector<16x256xf32>
    %123 = arith.addf %120, %122 : vector<16x256xf32>
    %cst_38 = arith.constant 0.000000e+00 : f32
    %124 = vector.broadcast %cst_38 : f32 to vector<16x256xf32>
    %125 = arith.maximumf %123, %124 : vector<16x256xf32>
    %126 = arith.truncf %125 : vector<16x256xf32> to vector<16x256xbf16>
    %c0_39 = arith.constant 0 : index
    %c0_40 = arith.constant 0 : index
    %127 = vector.load %arg12[%c0_39, %c0_40] : memref<256x128xbf16, #tpu.memory_space<vmem>>, vector<256x128xbf16>
    %cst_41 = arith.constant dense<0.000000e+00> : vector<16x128xf32>
    %128 = tpu.matmul %126, %127, %cst_41 {dimension_numbers = #tpu.dot_dimension_numbers<[1], [0], [0], [1], [0, 0, 1, 1], [], []>} : vector<16x256xbf16>, vector<256x128xbf16>, vector<16x128xf32> -> vector<16x128xf32>
    %c0_42 = arith.constant 0 : index
    %c0_43 = arith.constant 0 : index
    %129 = vector.load %arg13[%c0_42, %c0_43] : memref<1x128xf32, #tpu.memory_space<vmem>>, vector<1x128xf32>
    %130 = vector.broadcast %129 : vector<1x128xf32> to vector<16x128xf32>
    %131 = arith.addf %128, %130 : vector<16x128xf32>
    %132 = arith.addf %131, %93 : vector<16x128xf32>
    %c0_44 = arith.constant 0 : index
    %c0_45 = arith.constant 0 : index
    %c0_46 = arith.constant 0 : index
    %133 = vector.load %arg14[%c0_44, %c0_45, %c0_46] : memref<1x16x128xf32, #tpu.memory_space<vmem>>, vector<1x16x128xf32>
    %134 = vector.shape_cast %133 : vector<1x16x128xf32> to vector<16x128xf32>
    %135 = vector.shape_cast %132 : vector<16x128xf32> to vector<1x16x128xf32>
    tpu.vector_store %arg14[%c0_44, %c0_45, %c0_46], %135 {strides = array<i32>} : memref<1x16x128xf32, #tpu.memory_space<vmem>>, vector<1x16x128xf32>,
    return
  }
  func.func @transform_0(%arg0: i32) -> (i32, i32, i32) {
    %c0_i32 = arith.constant 0 : i32
    %c0_i32_0 = arith.constant 0 : i32
    %c0_i32_1 = arith.constant 0 : i32
    return %arg0, %c0_i32, %c0_i32_0 : i32, i32, i32
  }
  func.func @transform_1(%arg0: i32) -> (i32, i32) {
    %c0_i32 = arith.constant 0 : i32
    %c0_i32_0 = arith.constant 0 : i32
    %c0_i32_1 = arith.constant 0 : i32
    return %c0_i32, %c0_i32_0 : i32, i32
  }
  func.func @transform_2(%arg0: i32) -> (i32, i32) {
    %c0_i32 = arith.constant 0 : i32
    %c0_i32_0 = arith.constant 0 : i32
    %c0_i32_1 = arith.constant 0 : i32
    return %c0_i32, %c0_i32_0 : i32, i32
  }
  func.func @transform_3(%arg0: i32) -> (i32, i32) {
    %c0_i32 = arith.constant 0 : i32
    %c0_i32_0 = arith.constant 0 : i32
    %c0_i32_1 = arith.constant 0 : i32
    return %c0_i32, %c0_i32_0 : i32, i32
  }
  func.func @transform_4(%arg0: i32) -> (i32, i32) {
    %c0_i32 = arith.constant 0 : i32
    %c0_i32_0 = arith.constant 0 : i32
    %c0_i32_1 = arith.constant 0 : i32
    return %c0_i32, %c0_i32_0 : i32, i32
  }
  func.func @transform_5(%arg0: i32) -> (i32, i32) {
    %c0_i32 = arith.constant 0 : i32
    %c0_i32_0 = arith.constant 0 : i32
    %c0_i32_1 = arith.constant 0 : i32
    return %c0_i32, %c0_i32_0 : i32, i32
  }
  func.func @transform_6(%arg0: i32) -> (i32, i32) {
    %c0_i32 = arith.constant 0 : i32
    %c0_i32_0 = arith.constant 0 : i32
    %c0_i32_1 = arith.constant 0 : i32
    return %c0_i32, %c0_i32_0 : i32, i32
  }
  func.func @transform_7(%arg0: i32) -> (i32, i32) {
    %c0_i32 = arith.constant 0 : i32
    %c0_i32_0 = arith.constant 0 : i32
    %c0_i32_1 = arith.constant 0 : i32
    return %c0_i32, %c0_i32_0 : i32, i32
  }
  func.func @transform_8(%arg0: i32) -> (i32, i32) {
    %c0_i32 = arith.constant 0 : i32
    %c0_i32_0 = arith.constant 0 : i32
    %c0_i32_1 = arith.constant 0 : i32
    return %c0_i32, %c0_i32_0 : i32, i32
  }
  func.func @transform_9(%arg0: i32) -> (i32, i32) {
    %c0_i32 = arith.constant 0 : i32
    %c0_i32_0 = arith.constant 0 : i32
    %c0_i32_1 = arith.constant 0 : i32
    return %c0_i32, %c0_i32_0 : i32, i32
  }
  func.func @transform_10(%arg0: i32) -> (i32, i32) {
    %c0_i32 = arith.constant 0 : i32
    %c0_i32_0 = arith.constant 0 : i32
    %c0_i32_1 = arith.constant 0 : i32
    return %c0_i32, %c0_i32_0 : i32, i32
  }
  func.func @transform_11(%arg0: i32) -> (i32, i32) {
    %c0_i32 = arith.constant 0 : i32
    %c0_i32_0 = arith.constant 0 : i32
    %c0_i32_1 = arith.constant 0 : i32
    return %c0_i32, %c0_i32_0 : i32, i32
  }
  func.func @transform_12(%arg0: i32) -> (i32, i32) {
    %c0_i32 = arith.constant 0 : i32
    %c0_i32_0 = arith.constant 0 : i32
    %c0_i32_1 = arith.constant 0 : i32
    return %c0_i32, %c0_i32_0 : i32, i32
  }
  func.func @transform_13(%arg0: i32) -> (i32, i32, i32) {
    %c0_i32 = arith.constant 0 : i32
    %c0_i32_0 = arith.constant 0 : i32
    %c0_i32_1 = arith.constant 0 : i32
    return %arg0, %c0_i32, %c0_i32_0 : i32, i32, i32
  }
}

</mosaic_0001>

<llo_original>
// kernel: tpu_custom_call.1
$region0: #{tpu_custom_call.1}
  #allocation0 [shape = 'u32[]', space=smem, size = 0x4, offset = 0x4, fixed_abs, tag = 'smem constant byte address 0x4 - core index']
  #allocation1 [shape = 'u32[144,128]{1,0:T(1,128)}', space=vmem, size = 0x12000, scoped, tag = 'internal scratch']
  %s0 = inlined_call_operand.hbm [shape: f32[2,16,128], index: 0, kind: input, shape index: {}]
  %s1 = inlined_call_operand.hbm [shape: f32[1,128], index: 1, kind: input, shape index: {}]
  %s2 = inlined_call_operand.hbm [shape: f32[1,128], index: 2, kind: input, shape index: {}]
  %s3 = inlined_call_operand.hbm [shape: bf16[128,384], index: 3, kind: input, shape index: {}]
  %s4 = inlined_call_operand.hbm [shape: f32[1,384], index: 4, kind: input, shape index: {}]
  %s5 = inlined_call_operand.hbm [shape: bf16[128,128], index: 5, kind: input, shape index: {}]
  %s6 = inlined_call_operand.hbm [shape: f32[1,128], index: 6, kind: input, shape index: {}]
  %s7 = inlined_call_operand.hbm [shape: f32[1,128], index: 7, kind: input, shape index: {}]
  %s8 = inlined_call_operand.hbm [shape: f32[1,128], index: 8, kind: input, shape index: {}]
  %s9 = inlined_call_operand.hbm [shape: bf16[128,256], index: 9, kind: input, shape index: {}]
  %s10 = inlined_call_operand.hbm [shape: f32[1,256], index: 10, kind: input, shape index: {}]
  %s11 = inlined_call_operand.hbm [shape: bf16[256,128], index: 11, kind: input, shape index: {}]
  %s12 = inlined_call_operand.hbm [shape: f32[1,128], index: 12, kind: input, shape index: {}]
  %s13 = inlined_call_operand.hbm [shape: f32[2,16,128], index: 13, kind: output, shape index: {}]
  %s14 = sld [smem:[#allocation0]]
  $region137: #{tpu_custom_call.1} parent=0
    _
  %s16 = ssub.s32 1, %s14
  %s17 = scalar_select 0, %s16, %s14
  $region1: #{tpu_custom_call.1} parent=0
    #allocation2 [shape = 'u8[16384]{0}', space=vmem, size = 0x4000, scoped, tag = 'input window, operand 0']
    #allocation3 [shape = 's32[2]{0}', space=sflag, size = 0x8, scoped, tag = 'scoped memory for tpu_custom_call.1']
    #allocation4 [shape = 's32[2]{0}', space=sflag, size = 0x8, scoped, tag = 'scoped memory for tpu_custom_call.1']
    #allocation5 [shape = 'u8[512]{0}', space=vmem, size = 0x400, scoped, tag = 'input window, operand 1, single buffered']
    #allocation6 [shape = 's32[1]{0}', space=sflag, size = 0x4, scoped, tag = 'scoped memory for tpu_custom_call.1']
    #allocation7 [shape = 'u8[512]{0}', space=vmem, size = 0x400, scoped, tag = 'input window, operand 2, single buffered']
    #allocation8 [shape = 'u8[98304]{0}', space=vmem, size = 0x18000, scoped, tag = 'input window, operand 3, single buffered']
    #allocation9 [shape = 's32[1]{0}', space=sflag, size = 0x4, scoped, tag = 'scoped memory for tpu_custom_call.1']
    #allocation10 [shape = 'u8[1536]{0}', space=vmem, size = 0x800, scoped, tag = 'input window, operand 4, single buffered']
    #allocation11 [shape = 'u8[32768]{0}', space=vmem, size = 0x8000, scoped, tag = 'input window, operand 5, single buffered']
    #allocation12 [shape = 's32[1]{0}', space=sflag, size = 0x4, scoped, tag = 'scoped memory for tpu_custom_call.1']
    #allocation13 [shape = 'u8[512]{0}', space=vmem, size = 0x400, scoped, tag = 'input window, operand 6, single buffered']
    #allocation14 [shape = 'u8[512]{0}', space=vmem, size = 0x400, scoped, tag = 'input window, operand 7, single buffered']
    #allocation15 [shape = 's32[1]{0}', space=sflag, size = 0x4, scoped, tag = 'scoped memory for tpu_custom_call.1']
    #allocation16 [shape = 'u8[512]{0}', space=vmem, size = 0x400, scoped, tag = 'input window, operand 8, single buffered']
    #allocation17 [shape = 'u8[65536]{0}', space=vmem, size = 0x10000, scoped, tag = 'input window, operand 9, single buffered']
    #allocation18 [shape = 's32[1]{0}', space=sflag, size = 0x4, scoped, tag = 'scoped memory for tpu_custom_call.1']
    #allocation19 [shape = 'u8[1024]{0}', space=vmem, size = 0x400, scoped, tag = 'input window, operand 10, single buffered']
    #allocation20 [shape = 'u8[65536]{0}', space=vmem, size = 0x10000, scoped, tag = 'input window, operand 11, single buffered']
    #allocation21 [shape = 's32[1]{0}', space=sflag, size = 0x4, scoped, tag = 'scoped memory for tpu_custom_call.1']
    #allocation22 [shape = 'u8[512]{0}', space=vmem, size = 0x400, scoped, tag = 'input window, operand 12, single buffered']
    #allocation23 [shape = 'u8[16384]{0}', space=vmem, size = 0x4000, scoped, tag = 'output window, operand 0']
    %18 = vsyncpa [#allocation3], 0
    %s19 = scalar_lea.sflag [#allocation3], 1
    %20 = vsyncpa %s19, 0
    %21 = vsyncpa [#allocation6], 0
    %22 = vsyncpa [#allocation9], 0
    %23 = vsyncpa [#allocation12], 0
    %24 = vsyncpa [#allocation15], 0
    %25 = vsyncpa [#allocation18], 0
    %26 = vsyncpa [#allocation21], 0
    %27 = vsyncpa [#allocation4], 0
    %s28 = scalar_lea.sflag [#allocation4], 1
    %29 = vsyncpa %s28, 0
    loop: start=0, step=1, limit=4
    $region2: #{tpu_custom_call.1} parent=1 // loop_pre_header
      _
    $region3: #{tpu_custom_call.1} parent=1 // loop_header
      %s31 = sphi 0, %s35
      %p32 = scmp.ge.s32.totalorder %s31, 4
      %s41 = sphi 0, %s43
      %s44 = sphi 0, %s41
      %s45 = sphi 0, %s44
      %s61 = sphi 0, %s45
      %s65 = sphi 0, %s65
      %s67 = sphi 0, %s65
      %s68 = sphi 0, %s67
      %s82 = sphi 0, %s68
      %s86 = sphi 0, %s86
      %s88 = sphi 0, %s86
      %s89 = sphi 0, %s88
      %s103 = sphi 0, %s89
      %s107 = sphi 0, %s107
      %s109 = sphi 0, %s107
      %s110 = sphi 0, %s109
      %s124 = sphi 0, %s110
      %s128 = sphi 0, %s128
      %s130 = sphi 0, %s128
      %s131 = sphi 0, %s130
      %s145 = sphi 0, %s131
      %s149 = sphi 0, %s149
      %s151 = sphi 0, %s149
      %s152 = sphi 0, %s151
      %s166 = sphi 0, %s152
      %s170 = sphi 0, %s170
      %s172 = sphi 0, %s170
      %s173 = sphi 0, %s172
      %s187 = sphi 0, %s173
      %s191 = sphi 0, %s191
      %s193 = sphi 0, %s191
      %s194 = sphi 0, %s193
      %s208 = sphi 0, %s194
      %s212 = sphi 0, %s212
      %s214 = sphi 0, %s212
      %s215 = sphi 0, %s214
      %s229 = sphi 0, %s215
      %s233 = sphi 0, %s233
      %s235 = sphi 0, %s233
      %s236 = sphi 0, %s235
      %s250 = sphi 0, %s236
      %s254 = sphi 0, %s254
      %s256 = sphi 0, %s254
      %s257 = sphi 0, %s256
      %s271 = sphi 0, %s257
      %s275 = sphi 0, %s275
      %s277 = sphi 0, %s275
      %s278 = sphi 0, %s277
      %s292 = sphi 0, %s278
      %s296 = sphi 0, %s296
      %s298 = sphi 0, %s296
      %s299 = sphi 0, %s298
      %s313 = sphi 0, %s299
      %s319 = sphi 0, %s321
      %s322 = sphi 0, %s319
      %s323 = sphi 0, %s322
      %s339 = sphi 0, %s323
    $region4: #{tpu_custom_call.1} parent=1 // loop_header_branch
      %34 = sbr.rel (%p32) target = $region8
    $region5: #{tpu_custom_call.1} parent=1 // loop_body
      %s36 = ssub.s32 %s31, 1
      %s37 = ssub.s32 %s31, 2
      %s38 = sadd.s32 %s31, 1
      %s39 = ssub.s32 %s31, %s38
      %p40 = scmp.eq.s32.totalorder %s39, 0
      %s42 = sadd.s32 %s41, 1
      %s43 = scalar_select %p40, %s41, %s42
      %p46 = pneg %p40
      %p47 = scmp.eq.s32.totalorder %s31, 1
      %p48 = por %p46, %p47
      %p49 = scmp.ne.s32.totalorder %s41, %s44
      %p50 = scmp.eq.s32.totalorder %s31, 0
      %p51 = por %p49, %p50
      %p52 = scmp.ne.s32.totalorder %s41, %s44
      %p53 = scmp.eq.s32.totalorder %s36, 1
      %p54 = por %p52, %p53
      %p55 = scmp.ne.s32.totalorder %s44, %s45
      %p56 = scmp.eq.s32.totalorder %s36, 0
      %p57 = por %p55, %p56
      %p58 = scmp.ne.s32.totalorder %s44, %s45
      %p59 = scmp.eq.s32.totalorder %s37, 1
      %p60 = por %p58, %p59
      %p62 = scmp.ne.s32.totalorder %s45, %s61
      %p63 = scmp.eq.s32.totalorder %s37, 0
      %p64 = por %p62, %p63
      %s66 = sadd.s32 %s65, 1
      %p69 = scmp.eq.s32.totalorder %s31, 1
      %p70 = scmp.ne.s32.totalorder %s65, %s67
      %p71 = scmp.eq.s32.totalorder %s31, 0
      %p72 = por %p70, %p71
      %p73 = scmp.ne.s32.totalorder %s65, %s67
      %p74 = scmp.eq.s32.totalorder %s36, 1
      %p75 = por %p73, %p74
      %p76 = scmp.ne.s32.totalorder %s67, %s68
      %p77 = scmp.eq.s32.totalorder %s36, 0
      %p78 = por %p76, %p77
      %p79 = scmp.ne.s32.totalorder %s67, %s68
      %p80 = scmp.eq.s32.totalorder %s37, 1
      %p81 = por %p79, %p80
      %p83 = scmp.ne.s32.totalorder %s68, %s82
      %p84 = scmp.eq.s32.totalorder %s37, 0
      %p85 = por %p83, %p84
      %s87 = sadd.s32 %s86, 1
      %p90 = scmp.eq.s32.totalorder %s31, 1
      %p91 = scmp.ne.s32.totalorder %s86, %s88
      %p92 = scmp.eq.s32.totalorder %s31, 0
      %p93 = por %p91, %p92
      %p94 = scmp.ne.s32.totalorder %s86, %s88
      %p95 = scmp.eq.s32.totalorder %s36, 1
      %p96 = por %p94, %p95
      %p97 = scmp.ne.s32.totalorder %s88, %s89
      %p98 = scmp.eq.s32.totalorder %s36, 0
      %p99 = por %p97, %p98
      %p100 = scmp.ne.s32.totalorder %s88, %s89
      %p101 = scmp.eq.s32.totalorder %s37, 1
      %p102 = por %p100, %p101
      %p104 = scmp.ne.s32.totalorder %s89, %s103
      %p105 = scmp.eq.s32.totalorder %s37, 0
      %p106 = por %p104, %p105
      %s108 = sadd.s32 %s107, 1
      %p111 = scmp.eq.s32.totalorder %s31, 1
      %p112 = scmp.ne.s32.totalorder %s107, %s109
      %p113 = scmp.eq.s32.totalorder %s31, 0
      %p114 = por %p112, %p113
      %p115 = scmp.ne.s32.totalorder %s107, %s109
      %p116 = scmp.eq.s32.totalorder %s36, 1
      %p117 = por %p115, %p116
      %p118 = scmp.ne.s32.totalorder %s109, %s110
      %p119 = scmp.eq.s32.totalorder %s36, 0
      %p120 = por %p118, %p119
      %p121 = scmp.ne.s32.totalorder %s109, %s110
      %p122 = scmp.eq.s32.totalorder %s37, 1
      %p123 = por %p121, %p122
      %p125 = scmp.ne.s32.totalorder %s110, %s124
      %p126 = scmp.eq.s32.totalorder %s37, 0
      %p127 = por %p125, %p126
      %s129 = sadd.s32 %s128, 1
      %p132 = scmp.eq.s32.totalorder %s31, 1
      %p133 = scmp.ne.s32.totalorder %s128, %s130
      %p134 = scmp.eq.s32.totalorder %s31, 0
      %p135 = por %p133, %p134
      %p136 = scmp.ne.s32.totalorder %s128, %s130
      %p137 = scmp.eq.s32.totalorder %s36, 1
      %p138 = por %p136, %p137
      %p139 = scmp.ne.s32.totalorder %s130, %s131
      %p140 = scmp.eq.s32.totalorder %s36, 0
      %p141 = por %p139, %p140
      %p142 = scmp.ne.s32.totalorder %s130, %s131
      %p143 = scmp.eq.s32.totalorder %s37, 1
      %p144 = por %p142, %p143
      %p146 = scmp.ne.s32.totalorder %s131, %s145
      %p147 = scmp.eq.s32.totalorder %s37, 0
      %p148 = por %p146, %p147
      %s150 = sadd.s32 %s149, 1
      %p153 = scmp.eq.s32.totalorder %s31, 1
      %p154 = scmp.ne.s32.totalorder %s149, %s151
      %p155 = scmp.eq.s32.totalorder %s31, 0
      %p156 = por %p154, %p155
      %p157 = scmp.ne.s32.totalorder %s149, %s151
      %p158 = scmp.eq.s32.totalorder %s36, 1
      %p159 = por %p157, %p158
      %p160 = scmp.ne.s32.totalorder %s151, %s152
      %p161 = scmp.eq.s32.totalorder %s36, 0
      %p162 = por %p160, %p161
      %p163 = scmp.ne.s32.totalorder %s151, %s152
      %p164 = scmp.eq.s32.totalorder %s37, 1
      %p165 = por %p163, %p164
      %p167 = scmp.ne.s32.totalorder %s152, %s166
      %p168 = scmp.eq.s32.totalorder %s37, 0
      %p169 = por %p167, %p168
      %s171 = sadd.s32 %s170, 1
      %p174 = scmp.eq.s32.totalorder %s31, 1
      %p175 = scmp.ne.s32.totalorder %s170, %s172
      %p176 = scmp.eq.s32.totalorder %s31, 0
      %p177 = por %p175, %p176
      %p178 = scmp.ne.s32.totalorder %s170, %s172
      %p179 = scmp.eq.s32.totalorder %s36, 1
      %p180 = por %p178, %p179
      %p181 = scmp.ne.s32.totalorder %s172, %s173
      %p182 = scmp.eq.s32.totalorder %s36, 0
      %p183 = por %p181, %p182
      %p184 = scmp.ne.s32.totalorder %s172, %s173
      %p185 = scmp.eq.s32.totalorder %s37, 1
      %p186 = por %p184, %p185
      %p188 = scmp.ne.s32.totalorder %s173, %s187
      %p189 = scmp.eq.s32.totalorder %s37, 0
      %p190 = por %p188, %p189
      %s192 = sadd.s32 %s191, 1
      %p195 = scmp.eq.s32.totalorder %s31, 1
      %p196 = scmp.ne.s32.totalorder %s191, %s193
      %p197 = scmp.eq.s32.totalorder %s31, 0
      %p198 = por %p196, %p197
      %p199 = scmp.ne.s32.totalorder %s191, %s193
      %p200 = scmp.eq.s32.totalorder %s36, 1
      %p201 = por %p199, %p200
      %p202 = scmp.ne.s32.totalorder %s193, %s194
      %p203 = scmp.eq.s32.totalorder %s36, 0
      %p204 = por %p202, %p203
      %p205 = scmp.ne.s32.totalorder %s193, %s194
      %p206 = scmp.eq.s32.totalorder %s37, 1
      %p207 = por %p205, %p206
      %p209 = scmp.ne.s32.totalorder %s194, %s208
      %p210 = scmp.eq.s32.totalorder %s37, 0
      %p211 = por %p209, %p210
      %s213 = sadd.s32 %s212, 1
      %p216 = scmp.eq.s32.totalorder %s31, 1
      %p217 = scmp.ne.s32.totalorder %s212, %s214
      %p218 = scmp.eq.s32.totalorder %s31, 0
      %p219 = por %p217, %p218
      %p220 = scmp.ne.s32.totalorder %s212, %s214
      %p221 = scmp.eq.s32.totalorder %s36, 1
      %p222 = por %p220, %p221
      %p223 = scmp.ne.s32.totalorder %s214, %s215
      %p224 = scmp.eq.s32.totalorder %s36, 0
      %p225 = por %p223, %p224
      %p226 = scmp.ne.s32.totalorder %s214, %s215
      %p227 = scmp.eq.s32.totalorder %s37, 1
      %p228 = por %p226, %p227
      %p230 = scmp.ne.s32.totalorder %s215, %s229
      %p231 = scmp.eq.s32.totalorder %s37, 0
      %p232 = por %p230, %p231
      %s234 = sadd.s32 %s233, 1
      %p237 = scmp.eq.s32.totalorder %s31, 1
      %p238 = scmp.ne.s32.totalorder %s233, %s235
      %p239 = scmp.eq.s32.totalorder %s31, 0
      %p240 = por %p238, %p239
      %p241 = scmp.ne.s32.totalorder %s233, %s235
      %p242 = scmp.eq.s32.totalorder %s36, 1
      %p243 = por %p241, %p242
      %p244 = scmp.ne.s32.totalorder %s235, %s236
      %p245 = scmp.eq.s32.totalorder %s36, 0
      %p246 = por %p244, %p245
      %p247 = scmp.ne.s32.totalorder %s235, %s236
      %p248 = scmp.eq.s32.totalorder %s37, 1
      %p249 = por %p247, %p248
      %p251 = scmp.ne.s32.totalorder %s236, %s250
      %p252 = scmp.eq.s32.totalorder %s37, 0
      %p253 = por %p251, %p252
      %s255 = sadd.s32 %s254, 1
      %p258 = scmp.eq.s32.totalorder %s31, 1
      %p259 = scmp.ne.s32.totalorder %s254, %s256
      %p260 = scmp.eq.s32.totalorder %s31, 0
      %p261 = por %p259, %p260
      %p262 = scmp.ne.s32.totalorder %s254, %s256
      %p263 = scmp.eq.s32.totalorder %s36, 1
      %p264 = por %p262, %p263
      %p265 = scmp.ne.s32.totalorder %s256, %s257
      %p266 = scmp.eq.s32.totalorder %s36, 0
      %p267 = por %p265, %p266
      %p268 = scmp.ne.s32.totalorder %s256, %s257
      %p269 = scmp.eq.s32.totalorder %s37, 1
      %p270 = por %p268, %p269
      %p272 = scmp.ne.s32.totalorder %s257, %s271
      %p273 = scmp.eq.s32.totalorder %s37, 0
      %p274 = por %p272, %p273
      %s276 = sadd.s32 %s275, 1
      %p279 = scmp.eq.s32.totalorder %s31, 1
      %p280 = scmp.ne.s32.totalorder %s275, %s277
      %p281 = scmp.eq.s32.totalorder %s31, 0
      %p282 = por %p280, %p281
      %p283 = scmp.ne.s32.totalorder %s275, %s277
      %p284 = scmp.eq.s32.totalorder %s36, 1
      %p285 = por %p283, %p284
      %p286 = scmp.ne.s32.totalorder %s277, %s278
      %p287 = scmp.eq.s32.totalorder %s36, 0
      %p288 = por %p286, %p287
      %p289 = scmp.ne.s32.totalorder %s277, %s278
      %p290 = scmp.eq.s32.totalorder %s37, 1
      %p291 = por %p289, %p290
      %p293 = scmp.ne.s32.totalorder %s278, %s292
      %p294 = scmp.eq.s32.totalorder %s37, 0
      %p295 = por %p293, %p294
      %s297 = sadd.s32 %s296, 1
      %p300 = scmp.eq.s32.totalorder %s31, 1
      %p301 = scmp.ne.s32.totalorder %s296, %s298
      %p302 = scmp.eq.s32.totalorder %s31, 0
      %p303 = por %p301, %p302
      %p304 = scmp.ne.s32.totalorder %s296, %s298
      %p305 = scmp.eq.s32.totalorder %s36, 1
      %p306 = por %p304, %p305
      %p307 = scmp.ne.s32.totalorder %s298, %s299
      %p308 = scmp.eq.s32.totalorder %s36, 0
      %p309 = por %p307, %p308
      %p310 = scmp.ne.s32.totalorder %s298, %s299
      %p311 = scmp.eq.s32.totalorder %s37, 1
      %p312 = por %p310, %p311
      %p314 = scmp.ne.s32.totalorder %s299, %s313
      %p315 = scmp.eq.s32.totalorder %s37, 0
      %p316 = por %p314, %p315
      %s317 = ssub.s32 %s31, %s38
      %p318 = scmp.eq.s32.totalorder %s317, 0
      %s320 = sadd.s32 %s319, 1
      %s321 = scalar_select %p318, %s319, %s320
      %p324 = pneg %p318
      %p325 = scmp.eq.s32.totalorder %s31, 1
      %p326 = por %p324, %p325
      %p327 = scmp.ne.s32.totalorder %s319, %s322
      %p328 = scmp.eq.s32.totalorder %s31, 0
      %p329 = por %p327, %p328
      %p330 = scmp.ne.s32.totalorder %s319, %s322
      %p331 = scmp.eq.s32.totalorder %s36, 1
      %p332 = por %p330, %p331
      %p333 = scmp.ne.s32.totalorder %s322, %s323
      %p334 = scmp.eq.s32.totalorder %s36, 0
      %p335 = por %p333, %p334
      %p336 = scmp.ne.s32.totalorder %s322, %s323
      %p337 = scmp.eq.s32.totalorder %s37, 1
      %p338 = por %p336, %p337
      %p340 = scmp.ne.s32.totalorder %s323, %s339
      %p341 = scmp.eq.s32.totalorder %s37, 0
      %p342 = por %p340, %p341
      %p343 = scmp.le.s32.totalorder 1, %s31
      %p344 = scmp.lt.s32.totalorder %s31, 3
      %p345 = pnand %p343, %p344
      %p346 = pneg %p345
      // Predicated region
      $region9: #{tpu_custom_call.1} parent=5 // pred_check
        _
      $region10: #{tpu_custom_call.1} parent=5 // pred_check_branch
        %348 = sbr.rel (%p345) target = $region12
      $region11: #{tpu_custom_call.1} parent=5 // pred_region
        %s349 = ssub.s32 %s31, 1
        // Predicated region
        $region13: #{tpu_custom_call.1} parent=11 // pred_check
          %p350 = pneg %p78
        $region14: #{tpu_custom_call.1} parent=11 // pred_check_branch
          %352 = sbr.rel (%p350) target = $region16
        $region15: #{tpu_custom_call.1} parent=11 // pred_region
          %s354 = ssub.s32 16, 16
          %355 = vsyncadd [#allocation6], %s354
          %s357 = sshll.u32 [#allocation5], 4
          %s358 = int_to_ptr.vmem [resolvable:$true] %s357
          %360 = dma.hbm_to_vmem [thread:$0]  %s1, 16, %s358, [#allocation6]
        $region16: #{tpu_custom_call.1} parent=11 // pred_fallthru
          _
        // Predicated region
        $region17: #{tpu_custom_call.1} parent=11 // pred_check
          %p361 = pneg %p99
        $region18: #{tpu_custom_call.1} parent=11 // pred_check_branch
          %363 = sbr.rel (%p361) target = $region20
        $region19: #{tpu_custom_call.1} parent=11 // pred_region
          %s365 = ssub.s32 16, 16
          %366 = vsyncadd [#allocation6], %s365
          %s368 = sshll.u32 [#allocation7], 4
          %s369 = int_to_ptr.vmem [resolvable:$true] %s368
          %371 = dma.hbm_to_vmem [thread:$0]  %s2, 16, %s369, [#allocation6]
        $region20: #{tpu_custom_call.1} parent=11 // pred_fallthru
          _
        // Predicated region
        $region21: #{tpu_custom_call.1} parent=11 // pred_check
          %p372 = pneg %p120
        $region22: #{tpu_custom_call.1} parent=11 // pred_check_branch
          %374 = sbr.rel (%p372) target = $region24
        $region23: #{tpu_custom_call.1} parent=11 // pred_region
          %s376 = ssub.s32 3072, 3072
          %377 = vsyncadd [#allocation9], %s376
          %s378 = sshll.u32 [#allocation8], 4
          %s379 = int_to_ptr.vmem [resolvable:$true] %s378
          %384 = dma.hbm_to_vmem [thread:$0]  %s3, 3072, %s379, [#allocation9], 192, 192, 12
        $region24: #{tpu_custom_call.1} parent=11 // pred_fallthru
          _
        // Predicated region
        $region25: #{tpu_custom_call.1} parent=11 // pred_check
          %p385 = pneg %p141
        $region26: #{tpu_custom_call.1} parent=11 // pred_check_branch
          %387 = sbr.rel (%p385) target = $region28
        $region27: #{tpu_custom_call.1} parent=11 // pred_region
          %s389 = ssub.s32 48, 48
          %390 = vsyncadd [#allocation9], %s389
          %s392 = sshll.u32 [#allocation10], 4
          %s393 = int_to_ptr.vmem [resolvable:$true] %s392
          %395 = dma.hbm_to_vmem [thread:$0]  %s4, 48, %s393, [#allocation9]
        $region28: #{tpu_custom_call.1} parent=11 // pred_fallthru
          _
        // Predicated region
        $region29: #{tpu_custom_call.1} parent=11 // pred_check
          %p396 = pneg %p162
        $region30: #{tpu_custom_call.1} parent=11 // pred_check_branch
          %398 = sbr.rel (%p396) target = $region32
        $region31: #{tpu_custom_call.1} parent=11 // pred_region
          %s400 = ssub.s32 1024, 1024
          %401 = vsyncadd [#allocation12], %s400
          %s402 = sshll.u32 [#allocation11], 4
          %s403 = int_to_ptr.vmem [resolvable:$true] %s402
          %408 = dma.hbm_to_vmem [thread:$0]  %s5, 1024, %s403, [#allocation12], 64, 64, 4
        $region32: #{tpu_custom_call.1} parent=11 // pred_fallthru
          _
        // Predicated region
        $region33: #{tpu_custom_call.1} parent=11 // pred_check
          %p409 = pneg %p183
        $region34: #{tpu_custom_call.1} parent=11 // pred_check_branch
          %411 = sbr.rel (%p409) target = $region36
        $region35: #{tpu_custom_call.1} parent=11 // pred_region
          %s413 = ssub.s32 16, 16
          %414 = vsyncadd [#allocation12], %s413
          %s416 = sshll.u32 [#allocation13], 4
          %s417 = int_to_ptr.vmem [resolvable:$true] %s416
          %419 = dma.hbm_to_vmem [thread:$0]  %s6, 16, %s417, [#allocation12]
        $region36: #{tpu_custom_call.1} parent=11 // pred_fallthru
          _
        // Predicated region
        $region37: #{tpu_custom_call.1} parent=11 // pred_check
          %p420 = pneg %p204
        $region38: #{tpu_custom_call.1} parent=11 // pred_check_branch
          %422 = sbr.rel (%p420) target = $region40
        $region39: #{tpu_custom_call.1} parent=11 // pred_region
          %s424 = ssub.s32 16, 16
          %425 = vsyncadd [#allocation15], %s424
          %s427 = sshll.u32 [#allocation14], 4
          %s428 = int_to_ptr.vmem [resolvable:$true] %s427
          %430 = dma.hbm_to_vmem [thread:$0]  %s7, 16, %s428, [#allocation15]
        $region40: #{tpu_custom_call.1} parent=11 // pred_fallthru
          _
        // Predicated region
        $region41: #{tpu_custom_call.1} parent=11 // pred_check
          %p431 = pneg %p225
        $region42: #{tpu_custom_call.1} parent=11 // pred_check_branch
          %433 = sbr.rel (%p431) target = $region44
        $region43: #{tpu_custom_call.1} parent=11 // pred_region
          %s435 = ssub.s32 16, 16
          %436 = vsyncadd [#allocation15], %s435
          %s438 = sshll.u32 [#allocation16], 4
          %s439 = int_to_ptr.vmem [resolvable:$true] %s438
          %441 = dma.hbm_to_vmem [thread:$0]  %s8, 16, %s439, [#allocation15]
        $region44: #{tpu_custom_call.1} parent=11 // pred_fallthru
          _
        // Predicated region
        $region45: #{tpu_custom_call.1} parent=11 // pred_check
          %p442 = pneg %p246
        $region46: #{tpu_custom_call.1} parent=11 // pred_check_branch
          %444 = sbr.rel (%p442) target = $region48
        $region47: #{tpu_custom_call.1} parent=11 // pred_region
          %s446 = ssub.s32 2048, 2048
          %447 = vsyncadd [#allocation18], %s446
          %s448 = sshll.u32 [#allocation17], 4
          %s449 = int_to_ptr.vmem [resolvable:$true] %s448
          %454 = dma.hbm_to_vmem [thread:$0]  %s9, 2048, %s449, [#allocation18], 128, 128, 8
        $region48: #{tpu_custom_call.1} parent=11 // pred_fallthru
          _
        // Predicated region
        $region49: #{tpu_custom_call.1} parent=11 // pred_check
          %p455 = pneg %p267
        $region50: #{tpu_custom_call.1} parent=11 // pred_check_branch
          %457 = sbr.rel (%p455) target = $region52
        $region51: #{tpu_custom_call.1} parent=11 // pred_region
          %s459 = ssub.s32 32, 32
          %460 = vsyncadd [#allocation18], %s459
          %s462 = sshll.u32 [#allocation19], 4
          %s463 = int_to_ptr.vmem [resolvable:$true] %s462
          %465 = dma.hbm_to_vmem [thread:$0]  %s10, 32, %s463, [#allocation18]
        $region52: #{tpu_custom_call.1} parent=11 // pred_fallthru
          _
        // Predicated region
        $region53: #{tpu_custom_call.1} parent=11 // pred_check
          %p466 = pneg %p288
        $region54: #{tpu_custom_call.1} parent=11 // pred_check_branch
          %468 = sbr.rel (%p466) target = $region56
        $region55: #{tpu_custom_call.1} parent=11 // pred_region
          %s470 = ssub.s32 2048, 2048
          %471 = vsyncadd [#allocation21], %s470
          %s472 = sshll.u32 [#allocation20], 4
          %s473 = int_to_ptr.vmem [resolvable:$true] %s472
          %478 = dma.hbm_to_vmem [thread:$0]  %s11, 2048, %s473, [#allocation21], 64, 64, 4
        $region56: #{tpu_custom_call.1} parent=11 // pred_fallthru
          _
        // Predicated region
        $region57: #{tpu_custom_call.1} parent=11 // pred_check
          %p479 = pneg %p309
        $region58: #{tpu_custom_call.1} parent=11 // pred_check_branch
          %481 = sbr.rel (%p479) target = $region60
        $region59: #{tpu_custom_call.1} parent=11 // pred_region
          %s483 = ssub.s32 16, 16
          %484 = vsyncadd [#allocation21], %s483
          %s486 = sshll.u32 [#allocation22], 4
          %s487 = int_to_ptr.vmem [resolvable:$true] %s486
          %489 = dma.hbm_to_vmem [thread:$0]  %s12, 16, %s487, [#allocation21]
        $region60: #{tpu_custom_call.1} parent=11 // pred_fallthru
          _
      $region12: #{tpu_custom_call.1} parent=5 // pred_fallthru
        _
      %p490 = scmp.lt.s32.totalorder %s31, 2
      // Predicated region
      $region61: #{tpu_custom_call.1} parent=5 // pred_check
        %p491 = pneg %p490
      $region62: #{tpu_custom_call.1} parent=5 // pred_check_branch
        %493 = sbr.rel (%p491) target = $region64
      $region63: #{tpu_custom_call.1} parent=5 // pred_region
        // Predicated region
        $region65: #{tpu_custom_call.1} parent=63 // pred_check
          %p494 = pneg %p51
        $region66: #{tpu_custom_call.1} parent=63 // pred_check_branch
          %496 = sbr.rel (%p494) target = $region68
        $region67: #{tpu_custom_call.1} parent=63 // pred_region
          %s497 = sand.u32 %s41, 1
          %s498 = scalar_lea.sflag [#allocation3], %s497
          %s499 = sand.u32 %s41, 1
          %s500 = smul.addr %s499, 16
          %s501 = scalar_lea.vmem [#allocation2], %s500
          %s503 = ssub.s32 256, 256
          %504 = vsyncadd %s498, %s503
          %s505 = smul.addr %s31, 2
          %s506 = smul.addr %s505, 128
          %s507 = scalar_lea.hbm %s0, %s506
          %s508 = sshll.u32 %s501, 4
          %s509 = int_to_ptr.vmem [resolvable:$true] %s508
          %514 = dma.hbm_to_vmem [thread:$0]  %s507, 256, %s509, %s498, 128, 128, 8
        $region68: #{tpu_custom_call.1} parent=63 // pred_fallthru
          _
      $region64: #{tpu_custom_call.1} parent=5 // pred_fallthru
        _
      %p515 = scmp.le.s32.totalorder 1, %s31
      %p516 = scmp.lt.s32.totalorder %s31, 3
      %p517 = pnand %p515, %p516
      %p518 = pneg %p517
      // Predicated region
      $region69: #{tpu_custom_call.1} parent=5 // pred_check
        _
      $region70: #{tpu_custom_call.1} parent=5 // pred_check_branch
        %520 = sbr.rel (%p517) target = $region72
      $region71: #{tpu_custom_call.1} parent=5 // pred_region
        %s521 = ssub.s32 %s31, 1
        %s522 = sand.u32 %s44, 1
        %s523 = scalar_lea.sflag [#allocation3], %s522
        %s524 = sand.u32 %s44, 1
        %s525 = smul.addr %s524, 16
        %s526 = scalar_lea.vmem [#allocation2], %s525
        // Predicated region
        $region73: #{tpu_custom_call.1} parent=71 // pred_check
          %p527 = pneg %p57
        $region74: #{tpu_custom_call.1} parent=71 // pred_check_branch
          %529 = sbr.rel (%p527) target = $region76
        $region75: #{tpu_custom_call.1} parent=71 // pred_region
          %530 = dma.done %s523, 256
        $region76: #{tpu_custom_call.1} parent=71 // pred_fallthru
          _
        // Predicated region
        $region77: #{tpu_custom_call.1} parent=71 // pred_check
          %p531 = pneg %p78
        $region78: #{tpu_custom_call.1} parent=71 // pred_check_branch
          %533 = sbr.rel (%p531) target = $region80
        $region79: #{tpu_custom_call.1} parent=71 // pred_region
          %534 = dma.done [#allocation6], 16
        $region80: #{tpu_custom_call.1} parent=71 // pred_fallthru
          _
        // Predicated region
        $region81: #{tpu_custom_call.1} parent=71 // pred_check
          %p535 = pneg %p99
        $region82: #{tpu_custom_call.1} parent=71 // pred_check_branch
          %537 = sbr.rel (%p535) target = $region84
        $region83: #{tpu_custom_call.1} parent=71 // pred_region
          %538 = dma.done [#allocation6], 16
        $region84: #{tpu_custom_call.1} parent=71 // pred_fallthru
          _
        // Predicated region
        $region85: #{tpu_custom_call.1} parent=71 // pred_check
          %p539 = pneg %p120
        $region86: #{tpu_custom_call.1} parent=71 // pred_check_branch
          %541 = sbr.rel (%p539) target = $region88
        $region87: #{tpu_custom_call.1} parent=71 // pred_region
          %542 = dma.done [#allocation9], 3072
        $region88: #{tpu_custom_call.1} parent=71 // pred_fallthru
          _
        // Predicated region
        $region89: #{tpu_custom_call.1} parent=71 // pred_check
          %p543 = pneg %p141
        $region90: #{tpu_custom_call.1} parent=71 // pred_check_branch
          %545 = sbr.rel (%p543) target = $region92
        $region91: #{tpu_custom_call.1} parent=71 // pred_region
          %546 = dma.done [#allocation9], 48
        $region92: #{tpu_custom_call.1} parent=71 // pred_fallthru
          _
        // Predicated region
        $region93: #{tpu_custom_call.1} parent=71 // pred_check
          %p547 = pneg %p162
        $region94: #{tpu_custom_call.1} parent=71 // pred_check_branch
          %549 = sbr.rel (%p547) target = $region96
        $region95: #{tpu_custom_call.1} parent=71 // pred_region
          %550 = dma.done [#allocation12], 1024
        $region96: #{tpu_custom_call.1} parent=71 // pred_fallthru
          _
        // Predicated region
        $region97: #{tpu_custom_call.1} parent=71 // pred_check
          %p551 = pneg %p183
        $region98: #{tpu_custom_call.1} parent=71 // pred_check_branch
          %553 = sbr.rel (%p551) target = $region100
        $region99: #{tpu_custom_call.1} parent=71 // pred_region
          %554 = dma.done [#allocation12], 16
        $region100: #{tpu_custom_call.1} parent=71 // pred_fallthru
          _
        // Predicated region
        $region101: #{tpu_custom_call.1} parent=71 // pred_check
          %p555 = pneg %p204
        $region102: #{tpu_custom_call.1} parent=71 // pred_check_branch
          %557 = sbr.rel (%p555) target = $region104
        $region103: #{tpu_custom_call.1} parent=71 // pred_region
          %558 = dma.done [#allocation15], 16
        $region104: #{tpu_custom_call.1} parent=71 // pred_fallthru
          _
        // Predicated region
        $region105: #{tpu_custom_call.1} parent=71 // pred_check
          %p559 = pneg %p225
        $region106: #{tpu_custom_call.1} parent=71 // pred_check_branch
          %561 = sbr.rel (%p559) target = $region108
        $region107: #{tpu_custom_call.1} parent=71 // pred_region
          %562 = dma.done [#allocation15], 16
        $region108: #{tpu_custom_call.1} parent=71 // pred_fallthru
          _
        // Predicated region
        $region109: #{tpu_custom_call.1} parent=71 // pred_check
          %p563 = pneg %p246
        $region110: #{tpu_custom_call.1} parent=71 // pred_check_branch
          %565 = sbr.rel (%p563) target = $region112
        $region111: #{tpu_custom_call.1} parent=71 // pred_region
          %566 = dma.done [#allocation18], 2048
        $region112: #{tpu_custom_call.1} parent=71 // pred_fallthru
          _
        // Predicated region
        $region113: #{tpu_custom_call.1} parent=71 // pred_check
          %p567 = pneg %p267
        $region114: #{tpu_custom_call.1} parent=71 // pred_check_branch
          %569 = sbr.rel (%p567) target = $region116
        $region115: #{tpu_custom_call.1} parent=71 // pred_region
          %570 = dma.done [#allocation18], 32
        $region116: #{tpu_custom_call.1} parent=71 // pred_fallthru
          _
        // Predicated region
        $region117: #{tpu_custom_call.1} parent=71 // pred_check
          %p571 = pneg %p288
        $region118: #{tpu_custom_call.1} parent=71 // pred_check_branch
          %573 = sbr.rel (%p571) target = $region120
        $region119: #{tpu_custom_call.1} parent=71 // pred_region
          %574 = dma.done [#allocation21], 2048
        $region120: #{tpu_custom_call.1} parent=71 // pred_fallthru
          _
        // Predicated region
        $region121: #{tpu_custom_call.1} parent=71 // pred_check
          %p575 = pneg %p309
        $region122: #{tpu_custom_call.1} parent=71 // pred_check_branch
          %577 = sbr.rel (%p575) target = $region124
        $region123: #{tpu_custom_call.1} parent=71 // pred_region
          %578 = dma.done [#allocation21], 16
        $region124: #{tpu_custom_call.1} parent=71 // pred_fallthru
          _
        %s579 = sand.u32 %s44, 1
        %s580 = scalar_lea.sflag [#allocation3], %s579
        %s581 = sand.u32 %s44, 1
        %s582 = smul.addr %s581, 16
        %s583 = scalar_lea.vmem [#allocation2], %s582
        %p584 = pneg %p57
        %p585 = pneg %p54
        %p586 = pneg %p78
        %p587 = pneg %p75
        %p588 = pneg %p99
        %p589 = pneg %p96
        %p590 = pneg %p120
        %p591 = pneg %p117
        %p592 = pneg %p141
        %p593 = pneg %p138
        %p594 = pneg %p162
        %p595 = pneg %p159
        %p596 = pneg %p183
        %p597 = pneg %p180
        %p598 = pneg %p204
        %p599 = pneg %p201
        %p600 = pneg %p225
        %p601 = pneg %p222
        %p602 = pneg %p246
        %p603 = pneg %p243
        %p604 = pneg %p267
        %p605 = pneg %p264
        %p606 = pneg %p288
        %p607 = pneg %p285
        %p608 = pneg %p309
        %p609 = pneg %p306
        %p610 = pneg %p335
        %p611 = pneg %p332
        %s612 = sand.u32 %s322, 1
        %s613 = scalar_lea.sflag [#allocation4], %s612
        %s614 = sand.u32 %s322, 1
        %s615 = smul.addr %s614, 16
        %s616 = scalar_lea.vmem [#allocation23], %s615
        %v618 = vld [vmem:[%s526] sm:$0xff]
        %v619 = vld [vmem:[%s526 + $0x8] sm:$0xff]
        %v620 = vld [vmem:[#allocation5] sm:$0x1]
        %v621 = vld [vmem:[#allocation7] sm:$0x1]
        %622 = vadd.xlane.f32.xlu0 %v618
        %v623 = vpop.xlane.xlu0 %622
        %624 = vadd.xlane.f32.xlu0 %v619
        %v625 = vpop.xlane.xlu0 %624
        %v626 = vrcp.pop 128.0
        %v627 = vmul.f32 %v623, %v626
        %v628 = vmul.f32 %v625, %v626
        %v629 = vmul.f32 %v618, %v618
        %v630 = vmul.f32 %v619, %v619
        %631 = vadd.xlane.f32.xlu0 %v629
        %v632 = vpop.xlane.xlu0 %631
        %633 = vadd.xlane.f32.xlu0 %v630
        %v634 = vpop.xlane.xlu0 %633
        %v635 = vmul.f32 %v632, %v626
        %v636 = vmul.f32 %v634, %v626
        %v637 = vmul.f32 %v627, %v627
        %v638 = vmul.f32 %v628, %v628
        %v639 = vsub.f32 %v635, %v637
        %v640 = vsub.f32 %v636, %v638
        %v641 = vsub.f32 %v618, %v627
        %v642 = vsub.f32 %v619, %v628
        %v643 = vadd.f32 %v639, 1e-05
        %v644 = vadd.f32 %v640, 1e-05
        %v645 = vrsqrt.pop %v643
        %v646 = vrsqrt.pop %v644
        %v647 = vmul.f32 %v641, %v645
        %v648 = vmul.f32 %v642, %v646
        %v650 = vlaneseq
        %v651 = vshrl.u32 %v650, 7
        %v652 = vsub.s32 0, %v651
        %v653 = vrot.slane %v620, %v652
        %v655 = vmul.f32 %v647, %v653
        %v656 = vmul.f32 %v648, %v653
        %v658 = vlaneseq
        %v659 = vshrl.u32 %v658, 7
        %v660 = vsub.s32 0, %v659
        %v661 = vrot.slane %v621, %v660
        %v663 = vadd.f32 %v655, %v661
        %v664 = vadd.f32 %v656, %v661
        %v665 = vpack.c.bf16 %v664, %v663
        %v666 = vld [vmem:[#allocation8] sm:$0xff]
        %v667 = vld [vmem:[#allocation8 + $0x8] sm:$0xf]
        %v668 = vld [vmem:[#allocation8 + $0xc] sm:$0xff]
        %v669 = vld [vmem:[#allocation8 + $0x14] sm:$0xf]
        %v670 = vld [vmem:[#allocation8 + $0x18] sm:$0xff]
        %v671 = vld [vmem:[#allocation8 + $0x20] sm:$0xf]
        %v672 = vld [vmem:[#allocation8 + $0x24] sm:$0xff]
        %v673 = vld [vmem:[#allocation8 + $0x2c] sm:$0xf]
        %v674 = vld [vmem:[#allocation8 + $0x30] sm:$0xff]
        %v675 = vld [vmem:[#allocation8 + $0x38] sm:$0xf]
        %v676 = vld [vmem:[#allocation8 + $0x3c] sm:$0xff]
        %v677 = vld [vmem:[#allocation8 + $0x44] sm:$0xf]
        %v678 = vld [vmem:[#allocation8 + $0x48] sm:$0xff]
        %v679 = vld [vmem:[#allocation8 + $0x50] sm:$0xf]
        %v680 = vld [vmem:[#allocation8 + $0x54] sm:$0xff]
        %v681 = vld [vmem:[#allocation8 + $0x5c] sm:$0xf]
        %v682 = vld [vmem:[#allocation8 + $0x60] sm:$0xff]
        %v683 = vld [vmem:[#allocation8 + $0x68] sm:$0xf]
        %v684 = vld [vmem:[#allocation8 + $0x6c] sm:$0xff]
        %v685 = vld [vmem:[#allocation8 + $0x74] sm:$0xf]
        %v686 = vld [vmem:[#allocation8 + $0x78] sm:$0xff]
        %v687 = vld [vmem:[#allocation8 + $0x80] sm:$0xf]
        %v688 = vld [vmem:[#allocation8 + $0x84] sm:$0xff]
        %v689 = vld [vmem:[#allocation8 + $0x8c] sm:$0xf]
        %v690 = vld [vmem:[#allocation8 + $0x90] sm:$0xff]
        %v691 = vld [vmem:[#allocation8 + $0x98] sm:$0xf]
        %v692 = vld [vmem:[#allocation8 + $0x9c] sm:$0xff]
        %v693 = vld [vmem:[#allocation8 + $0xa4] sm:$0xf]
        %v694 = vld [vmem:[#allocation8 + $0xa8] sm:$0xff]
        %v695 = vld [vmem:[#allocation8 + $0xb0] sm:$0xf]
        %v696 = vld [vmem:[#allocation8 + $0xb4] sm:$0xff]
        %v697 = vld [vmem:[#allocation8 + $0xbc] sm:$0xf]
        %v698 = vld [vmem:[#allocation10] sm:$0x7]
        %v700 = vlaneseq
        %v701 = vshrl.u32 %v700, 7
        %v702 = vsub.s32 0, %v701
        %v703 = vrot.slane %v698, %v702
        %v704 = vlaneseq
        %v705 = vshrl.u32 %v704, 7
        %v706 = vsub.s32 1, %v705
        %v707 = vrot.slane %v698, %v706
        %v708 = vlaneseq
        %v709 = vshrl.u32 %v708, 7
        %v710 = vsub.s32 2, %v709
        %v711 = vrot.slane %v698, %v710
        %v747 = vunpack.c.l.b16 %v666
        %v748 = vunpack.c.h.b16 %v666
        %v749 = vunpack.c.l.b16 %v667
        %v750 = vunpack.c.l.b16 %v668
        %v751 = vunpack.c.h.b16 %v668
        %v752 = vunpack.c.l.b16 %v669
        %v753 = vunpack.c.l.b16 %v670
        %v754 = vunpack.c.h.b16 %v670
        %v755 = vunpack.c.l.b16 %v671
        %v756 = vunpack.c.l.b16 %v672
        %v757 = vunpack.c.h.b16 %v672
        %v758 = vunpack.c.l.b16 %v673
        %v759 = vunpack.c.l.b16 %v674
        %v760 = vunpack.c.h.b16 %v674
        %v761 = vunpack.c.l.b16 %v675
        %v762 = vunpack.c.l.b16 %v676
        %v763 = vunpack.c.h.b16 %v676
        %v764 = vunpack.c.l.b16 %v677
        %v765 = vunpack.c.l.b16 %v678
        %v766 = vunpack.c.h.b16 %v678
        %v767 = vunpack.c.l.b16 %v679
        %v768 = vunpack.c.l.b16 %v680
        %v769 = vunpack.c.h.b16 %v680
        %v770 = vunpack.c.l.b16 %v681
        %v771 = vunpack.c.l.b16 %v682
        %v772 = vunpack.c.h.b16 %v682
        %v773 = vunpack.c.l.b16 %v683
        %v774 = vunpack.c.l.b16 %v684
        %v775 = vunpack.c.h.b16 %v684
        %v776 = vunpack.c.l.b16 %v685
        %v777 = vunpack.c.l.b16 %v686
        %v778 = vunpack.c.h.b16 %v686
        %v779 = vunpack.c.l.b16 %v687
        %v780 = vunpack.c.l.b16 %v688
        %v781 = vunpack.c.h.b16 %v688
        %v782 = vunpack.c.l.b16 %v689
        %v783 = vunpack.c.l.b16 %v690
        %v784 = vunpack.c.h.b16 %v690
        %v785 = vunpack.c.l.b16 %v691
        %v786 = vunpack.c.l.b16 %v692
        %v787 = vunpack.c.h.b16 %v692
        %v788 = vunpack.c.l.b16 %v693
        %v789 = vunpack.c.l.b16 %v694
        %v790 = vunpack.c.h.b16 %v694
        %v791 = vunpack.c.l.b16 %v695
        %v792 = vunpack.c.l.b16 %v696
        %v793 = vunpack.c.h.b16 %v696
        %v794 = vunpack.c.l.b16 %v697
        %v795 = vpack.c.b16 %v750, %v747
        %v796 = vpack.c.b16 %v751, %v748
        %v797 = vpack.c.b16 %v752, %v749
        %v798 = vpack.c.b16 %v756, %v753
        %v799 = vpack.c.b16 %v757, %v754
        %v800 = vpack.c.b16 %v758, %v755
        %v801 = vpack.c.b16 %v762, %v759
        %v802 = vpack.c.b16 %v763, %v760
        %v803 = vpack.c.b16 %v764, %v761
        %v804 = vpack.c.b16 %v768, %v765
        %v805 = vpack.c.b16 %v769, %v766
        %v806 = vpack.c.b16 %v770, %v767
        %v807 = vpack.c.b16 %v774, %v771
        %v808 = vpack.c.b16 %v775, %v772
        %v809 = vpack.c.b16 %v776, %v773
        %v810 = vpack.c.b16 %v780, %v777
        %v811 = vpack.c.b16 %v781, %v778
        %v812 = vpack.c.b16 %v782, %v779
        %v813 = vpack.c.b16 %v786, %v783
        %v814 = vpack.c.b16 %v787, %v784
        %v815 = vpack.c.b16 %v788, %v785
        %v816 = vpack.c.b16 %v792, %v789
        %v817 = vpack.c.b16 %v793, %v790
        %v818 = vpack.c.b16 %v794, %v791
        %843 = vmatprep.subr.bf16.mxu0 %v796
        %844 = vmatpush1.bf16.msra.mxu0 %v795
        %845 = vmatprep.subr.bf16.mxu0 %v799
        %846 = vmatpush1.bf16.msra.mxu0 %v798
        %847 = vmatprep.subr.bf16.mxu0 %v802
        %848 = vmatpush1.bf16.msra.mxu0 %v801
        %849 = vmatprep.subr.bf16.mxu0 %v805
        %850 = vmatpush1.bf16.msra.mxu0 %v804
        %851 = vmatprep.subr.bf16.mxu0 %v808
        %852 = vmatpush1.bf16.msra.mxu0 %v807
        %853 = vmatprep.subr.bf16.mxu0 %v811
        %854 = vmatpush1.bf16.msra.mxu0 %v810
        %855 = vmatprep.subr.bf16.mxu0 %v814
        %856 = vmatpush1.bf16.msra.mxu0 %v813
        %857 = vmatprep.subr.bf16.mxu0 %v817
        %858 = vmatpush1.bf16.msra.mxu0 %v816
        %859 = vmatprep.subr.bf16.mxu0 0
        %860 = vmatpush1.bf16.msra.mxu0 0
        %861 = vmatprep.subr.bf16.mxu0 0
        %862 = vmatpush1.bf16.msra.mxu0 0
        %863 = vmatprep.subr.bf16.mxu0 0
        %864 = vmatpush1.bf16.msra.mxu0 0
        %865 = vmatprep.subr.bf16.mxu0 0
        %866 = vmatpush1.bf16.msra.mxu0 0
        %867 = vmatprep.subr.bf16.mxu0 0
        %868 = vmatpush1.bf16.msra.mxu0 0
        %869 = vmatprep.subr.bf16.mxu0 0
        %870 = vmatpush1.bf16.msra.mxu0 0
        %871 = vmatprep.subr.bf16.mxu0 0
        %872 = vmatpush1.bf16.msra.mxu0 0
        %873 = vmatprep.subr.bf16.mxu0 0
        %874 = vmatpush1.bf16.msra.mxu0 0
        %875 = vmatprep.mubr.bf16.mxu0 0
        %876 = vmatmul.mubr.bf16.gmra.mrb[0].mxu0 %v665
        %v877 = vpop.f32.mrb[0].mxu0
        %v878 = vadd.f32 %v703, %v877
        %v879 = vpop.f32.mrb[0].mxu0
        %v880 = vadd.f32 %v707, %v879
        %v881 = vpop.f32.mrb[0].mxu0
        %v882 = vadd.f32 %v703, %v881
        %v883 = vpop.f32.mrb[0].mxu0
        %v884 = vadd.f32 %v707, %v883
        %885 = vdwg.mxu0
        %886 = vmatprep.subr.bf16.mxu0 0
        %887 = vmatpush1.bf16.msra.mxu0 %v797
        %888 = vmatprep.subr.bf16.mxu0 0
        %889 = vmatpush1.bf16.msra.mxu0 %v800
        %890 = vmatprep.subr.bf16.mxu0 0
        %891 = vmatpush1.bf16.msra.mxu0 %v803
        %892 = vmatprep.subr.bf16.mxu0 0
        %893 = vmatpush1.bf16.msra.mxu0 %v806
        %894 = vmatprep.subr.bf16.mxu0 0
        %895 = vmatpush1.bf16.msra.mxu0 %v809
        %896 = vmatprep.subr.bf16.mxu0 0
        %897 = vmatpush1.bf16.msra.mxu0 %v812
        %898 = vmatprep.subr.bf16.mxu0 0
        %899 = vmatpush1.bf16.msra.mxu0 %v815
        %900 = vmatprep.subr.bf16.mxu0 0
        %901 = vmatpush1.bf16.msra.mxu0 %v818
        %902 = vmatprep.subr.bf16.mxu0 0
        %903 = vmatpush1.bf16.msra.mxu0 0
        %904 = vmatprep.subr.bf16.mxu0 0
        %905 = vmatpush1.bf16.msra.mxu0 0
        %906 = vmatprep.subr.bf16.mxu0 0
        %907 = vmatpush1.bf16.msra.mxu0 0
        %908 = vmatprep.subr.bf16.mxu0 0
        %909 = vmatpush1.bf16.msra.mxu0 0
        %910 = vmatprep.subr.bf16.mxu0 0
        %911 = vmatpush1.bf16.msra.mxu0 0
        %912 = vmatprep.subr.bf16.mxu0 0
        %913 = vmatpush1.bf16.msra.mxu0 0
        %914 = vmatprep.subr.bf16.mxu0 0
        %915 = vmatpush1.bf16.msra.mxu0 0
        %916 = vmatprep.subr.bf16.mxu0 0
        %917 = vmatpush1.bf16.msra.mxu0 0
        %918 = vmatprep.mubr.bf16.mxu0 0
        %919 = vmatmul.mubr.bf16.gmra.mrb[0].mxu0 %v665
        %v920 = vpop.f32.mrb[0].mxu0
        %v921 = vadd.f32 %v711, %v920
        %v922 = vpop.f32.mrb[0].mxu0
        %v923 = vpop.f32.mrb[0].mxu0
        %v924 = vadd.f32 %v711, %v923
        %v925 = vpop.f32.mrb[0].mxu0
        %926 = vdwg.mxu0
        %v927 = vpack.c.bf16 %v882, %v878
        %929 = vrot.lane.b32.xlu0 %v927, 96
        %v930 = vpop.permute.xlu0 %929
        %931 = vrot.lane.b32.xlu0 %v927, 64
        %v932 = vpop.permute.xlu0 %931
        %933 = vrot.lane.b32.xlu0 %v927, 32
        %v934 = vpop.permute.xlu0 %933
        %v935 = vpack.c.bf16 %v884, %v880
        %937 = vrot.lane.b32.xlu0 %v935, 96
        %v938 = vpop.permute.xlu0 %937
        %939 = vrot.lane.b32.xlu0 %v935, 64
        %v940 = vpop.permute.xlu0 %939
        %941 = vrot.lane.b32.xlu0 %v935, 32
        %v942 = vpop.permute.xlu0 %941
        %v943 = vpack.c.bf16 %v924, %v921
        %945 = vrot.lane.b32.xlu0 %v943, 96
        %v946 = vpop.permute.xlu0 %945
        %948 = vrot.lane.b32.xlu0 %v943, 64
        %v949 = vpop.permute.xlu0 %948
        %951 = vrot.lane.b32.xlu0 %v943, 32
        %v952 = vpop.permute.xlu0 %951
        %vm954 = vcmask 261120
        %v956 = vsel %vm954, %v927, 0
        %v959 = vsel %vm954, %v935, 0
        %961 = vmatprep.subr.bf16.mxu0 0
        %962 = vmatpush1.bf16.xpose.msra.mxu0 %v959
        %963 = vmatprep.subr.bf16.mxu0 0
        %964 = vmatpush1.bf16.xpose.msra.mxu0 0
        %965 = vmatprep.subr.bf16.mxu0 0
        %966 = vmatpush1.bf16.xpose.msra.mxu0 0
        %967 = vmatprep.subr.bf16.mxu0 0
        %968 = vmatpush1.bf16.xpose.msra.mxu0 0
        %969 = vmatprep.subr.bf16.mxu0 0
        %970 = vmatpush1.bf16.xpose.msra.mxu0 0
        %971 = vmatprep.subr.bf16.mxu0 0
        %972 = vmatpush1.bf16.xpose.msra.mxu0 0
        %973 = vmatprep.subr.bf16.mxu0 0
        %974 = vmatpush1.bf16.xpose.msra.mxu0 0
        %975 = vmatprep.subr.bf16.mxu0 0
        %976 = vmatpush1.bf16.xpose.msra.mxu0 0
        %977 = vmatprep.subr.bf16.mxu0 0
        %978 = vmatpush1.bf16.xpose.msra.mxu0 0
        %979 = vmatprep.subr.bf16.mxu0 0
        %980 = vmatpush1.bf16.xpose.msra.mxu0 0
        %981 = vmatprep.subr.bf16.mxu0 0
        %982 = vmatpush1.bf16.xpose.msra.mxu0 0
        %983 = vmatprep.subr.bf16.mxu0 0
        %984 = vmatpush1.bf16.xpose.msra.mxu0 0
        %985 = vmatprep.subr.bf16.mxu0 0
        %986 = vmatpush1.bf16.xpose.msra.mxu0 0
        %987 = vmatprep.subr.bf16.mxu0 0
        %988 = vmatpush1.bf16.xpose.msra.mxu0 0
        %989 = vmatprep.subr.bf16.mxu0 0
        %990 = vmatpush1.bf16.xpose.msra.mxu0 0
        %991 = vmatprep.subr.bf16.mxu0 0
        %992 = vmatpush1.bf16.xpose.msra.mxu0 0
        %993 = vmatprep.mubr.bf16.mxu0 0
        %994 = vmatmul.mubr.bf16.gmra.mrb[0].mxu0 %v956
        %v995 = vpop.f32.mrb[0].mxu0
        %v996 = vadd.f32 0.0, %v995
        %v997 = vpop.f32.mrb[0].mxu0
        %v998 = vpop.f32.mrb[0].mxu0
        %v999 = vadd.f32 0.0, %v998
        %v1000 = vpop.f32.mrb[0].mxu0
        %1001 = vdwg.mxu0
        %v1003 = vsel %vm954, %v930, 0
        %v1006 = vsel %vm954, %v938, 0
        %1008 = vmatprep.subr.bf16.mxu0 0
        %1009 = vmatpush1.bf16.xpose.msra.mxu0 %v1006
        %1010 = vmatprep.subr.bf16.mxu0 0
        %1011 = vmatpush1.bf16.xpose.msra.mxu0 0
        %1012 = vmatprep.subr.bf16.mxu0 0
        %1013 = vmatpush1.bf16.xpose.msra.mxu0 0
        %1014 = vmatprep.subr.bf16.mxu0 0
        %1015 = vmatpush1.bf16.xpose.msra.mxu0 0
        %1016 = vmatprep.subr.bf16.mxu0 0
        %1017 = vmatpush1.bf16.xpose.msra.mxu0 0
        %1018 = vmatprep.subr.bf16.mxu0 0
        %1019 = vmatpush1.bf16.xpose.msra.mxu0 0
        %1020 = vmatprep.subr.bf16.mxu0 0
        %1021 = vmatpush1.bf16.xpose.msra.mxu0 0
        %1022 = vmatprep.subr.bf16.mxu0 0
        %1023 = vmatpush1.bf16.xpose.msra.mxu0 0
        %1024 = vmatprep.subr.bf16.mxu0 0
        %1025 = vmatpush1.bf16.xpose.msra.mxu0 0
        %1026 = vmatprep.subr.bf16.mxu0 0
        %1027 = vmatpush1.bf16.xpose.msra.mxu0 0
        %1028 = vmatprep.subr.bf16.mxu0 0
        %1029 = vmatpush1.bf16.xpose.msra.mxu0 0
        %1030 = vmatprep.subr.bf16.mxu0 0
        %1031 = vmatpush1.bf16.xpose.msra.mxu0 0
        %1032 = vmatprep.subr.bf16.mxu0 0
        %1033 = vmatpush1.bf16.xpose.msra.mxu0 0
        %1034 = vmatprep.subr.bf16.mxu0 0
        %1035 = vmatpush1.bf16.xpose.msra.mxu0 0
        %1036 = vmatprep.subr.bf16.mxu0 0
        %1037 = vmatpush1.bf16.xpose.msra.mxu0 0
        %1038 = vmatprep.subr.bf16.mxu0 0
        %1039 = vmatpush1.bf16.xpose.msra.mxu0 0
        %1040 = vmatprep.mubr.bf16.mxu0 0
        %1041 = vmatmul.mubr.bf16.gmra.mrb[0].mxu0 %v1003
        %v1042 = vpop.f32.mrb[0].mxu0
        %v1043 = vadd.f32 0.0, %v1042
        %v1044 = vpop.f32.mrb[0].mxu0
        %v1045 = vpop.f32.mrb[0].mxu0
        %v1046 = vadd.f32 0.0, %v1045
        %v1047 = vpop.f32.mrb[0].mxu0
        %1048 = vdwg.mxu0
        %v1050 = vsel %vm954, %v932, 0
        %v1053 = vsel %vm954, %v940, 0
        %1055 = vmatprep.subr.bf16.mxu0 0
        %1056 = vmatpush1.bf16.xpose.msra.mxu0 %v1053
        %1057 = vmatprep.subr.bf16.mxu0 0
        %1058 = vmatpush1.bf16.xpose.msra.mxu0 0
        %1059 = vmatprep.subr.bf16.mxu0 0
        %1060 = vmatpush1.bf16.xpose.msra.mxu0 0
        %1061 = vmatprep.subr.bf16.mxu0 0
        %1062 = vmatpush1.bf16.xpose.msra.mxu0 0
        %1063 = vmatprep.subr.bf16.mxu0 0
        %1064 = vmatpush1.bf16.xpose.msra.mxu0 0
        %1065 = vmatprep.subr.bf16.mxu0 0
        %1066 = vmatpush1.bf16.xpose.msra.mxu0 0
        %1067 = vmatprep.subr.bf16.mxu0 0
        %1068 = vmatpush1.bf16.xpose.msra.mxu0 0
        %1069 = vmatprep.subr.bf16.mxu0 0
        %1070 = vmatpush1.bf16.xpose.msra.mxu0 0
        %1071 = vmatprep.subr.bf16.mxu0 0
        %1072 = vmatpush1.bf16.xpose.msra.mxu0 0
        %1073 = vmatprep.subr.bf16.mxu0 0
        %1074 = vmatpush1.bf16.xpose.msra.mxu0 0
        %1075 = vmatprep.subr.bf16.mxu0 0
        %1076 = vmatpush1.bf16.xpose.msra.mxu0 0
        %1077 = vmatprep.subr.bf16.mxu0 0
        %1078 = vmatpush1.bf16.xpose.msra.mxu0 0
        %1079 = vmatprep.subr.bf16.mxu0 0
        %1080 = vmatpush1.bf16.xpose.msra.mxu0 0
        %1081 = vmatprep.subr.bf16.mxu0 0
        %1082 = vmatpush1.bf16.xpose.msra.mxu0 0
        %1083 = vmatprep.subr.bf16.mxu0 0
        %1084 = vmatpush1.bf16.xpose.msra.mxu0 0
        %1085 = vmatprep.subr.bf16.mxu0 0
        %1086 = vmatpush1.bf16.xpose.msra.mxu0 0
        %1087 = vmatprep.mubr.bf16.mxu0 0
        %1088 = vmatmul.mubr.bf16.gmra.mrb[0].mxu0 %v1050
        %v1089 = vpop.f32.mrb[0].mxu0
        %v1090 = vadd.f32 0.0, %v1089
        %v1091 = vpop.f32.mrb[0].mxu0
        %v1092 = vpop.f32.mrb[0].mxu0
        %v1093 = vadd.f32 0.0, %v1092
        %v1094 = vpop.f32.mrb[0].mxu0
        %1095 = vdwg.mxu0
        %v1097 = vsel %vm954, %v934, 0
        %v1100 = vsel %vm954, %v942, 0
        %1102 = vmatprep.subr.bf16.mxu0 0
        %1103 = vmatpush1.bf16.xpose.msra.mxu0 %v1100
        %1104 = vmatprep.subr.bf16.mxu0 0
        %1105 = vmatpush1.bf16.xpose.msra.mxu0 0
        %1106 = vmatprep.subr.bf16.mxu0 0
        %1107 = vmatpush1.bf16.xpose.msra.mxu0 0
        %1108 = vmatprep.subr.bf16.mxu0 0
        %1109 = vmatpush1.bf16.xpose.msra.mxu0 0
        %1110 = vmatprep.subr.bf16.mxu0 0
        %1111 = vmatpush1.bf16.xpose.msra.mxu0 0
        %1112 = vmatprep.subr.bf16.mxu0 0
        %1113 = vmatpush1.bf16.xpose.msra.mxu0 0
        %1114 = vmatprep.subr.bf16.mxu0 0
        %1115 = vmatpush1.bf16.xpose.msra.mxu0 0
        %1116 = vmatprep.subr.bf16.mxu0 0
        %1117 = vmatpush1.bf16.xpose.msra.mxu0 0
        %1118 = vmatprep.subr.bf16.mxu0 0
        %1119 = vmatpush1.bf16.xpose.msra.mxu0 0
        %1120 = vmatprep.subr.bf16.mxu0 0
        %1121 = vmatpush1.bf16.xpose.msra.mxu0 0
        %1122 = vmatprep.subr.bf16.mxu0 0
        %1123 = vmatpush1.bf16.xpose.msra.mxu0 0
        %1124 = vmatprep.subr.bf16.mxu0 0
        %1125 = vmatpush1.bf16.xpose.msra.mxu0 0
        %1126 = vmatprep.subr.bf16.mxu0 0
        %1127 = vmatpush1.bf16.xpose.msra.mxu0 0
        %1128 = vmatprep.subr.bf16.mxu0 0
        %1129 = vmatpush1.bf16.xpose.msra.mxu0 0
        %1130 = vmatprep.subr.bf16.mxu0 0
        %1131 = vmatpush1.bf16.xpose.msra.mxu0 0
        %1132 = vmatprep.subr.bf16.mxu0 0
        %1133 = vmatpush1.bf16.xpose.msra.mxu0 0
        %1134 = vmatprep.mubr.bf16.mxu0 0
        %1135 = vmatmul.mubr.bf16.gmra.mrb[0].mxu0 %v1097
        %v1136 = vpop.f32.mrb[0].mxu0
        %v1137 = vadd.f32 0.0, %v1136
        %v1138 = vpop.f32.mrb[0].mxu0
        %v1139 = vpop.f32.mrb[0].mxu0
        %v1140 = vadd.f32 0.0, %v1139
        %v1141 = vpop.f32.mrb[0].mxu0
        %1142 = vdwg.mxu0
        %vm1143 = vcmask 130048
        %v1144 = vsel %vm1143, %v996, -inf
        %1145 = vmax.xlane.f32.xlu0 %v1144
        %v1146 = vpop.xlane.xlu0 %1145
        %v1147 = vsel %vm1143, %v999, -inf
        %1148 = vmax.xlane.f32.xlu0 %v1147
        %v1149 = vpop.xlane.xlu0 %1148
        %v1150 = vsel %vm1143, %v1043, -inf
        %1151 = vmax.xlane.f32.xlu0 %v1150
        %v1152 = vpop.xlane.xlu0 %1151
        %v1153 = vsel %vm1143, %v1046, -inf
        %1154 = vmax.xlane.f32.xlu0 %v1153
        %v1155 = vpop.xlane.xlu0 %1154
        %v1156 = vsel %vm1143, %v1090, -inf
        %1157 = vmax.xlane.f32.xlu0 %v1156
        %v1158 = vpop.xlane.xlu0 %1157
        %v1159 = vsel %vm1143, %v1093, -inf
        %1160 = vmax.xlane.f32.xlu0 %v1159
        %v1161 = vpop.xlane.xlu0 %1160
        %v1162 = vsel %vm1143, %v1137, -inf
        %1163 = vmax.xlane.f32.xlu0 %v1162
        %v1164 = vpop.xlane.xlu0 %1163
        %v1165 = vsel %vm1143, %v1140, -inf
        %1166 = vmax.xlane.f32.xlu0 %v1165
        %v1167 = vpop.xlane.xlu0 %1166
        %v1168 = vsub.f32 %v996, %v1146
        %v1169 = vsub.f32 %v999, %v1149
        %v1170 = vsub.f32 %v1043, %v1152
        %v1171 = vsub.f32 %v1046, %v1155
        %v1172 = vsub.f32 %v1090, %v1158
        %v1173 = vsub.f32 %v1093, %v1161
        %v1174 = vsub.f32 %v1137, %v1164
        %v1175 = vsub.f32 %v1140, %v1167
        %v1176 = vmul.f32 %v1168, 1.442695
        %v1177 = vpow.pop %v1176
        %v1178 = vmul.f32 %v1169, 1.442695
        %v1179 = vpow.pop %v1178
        %v1180 = vmul.f32 %v1170, 1.442695
        %v1181 = vpow.pop %v1180
        %v1182 = vmul.f32 %v1171, 1.442695
        %v1183 = vpow.pop %v1182
        %v1184 = vmul.f32 %v1172, 1.442695
        %v1185 = vpow.pop %v1184
        %v1186 = vmul.f32 %v1173, 1.442695
        %v1187 = vpow.pop %v1186
        %v1188 = vmul.f32 %v1174, 1.442695
        %v1189 = vpow.pop %v1188
        %v1190 = vmul.f32 %v1175, 1.442695
        %v1191 = vpow.pop %v1190
        %v1192 = vsel %vm1143, %v1177, 0.0
        %1193 = vadd.xlane.f32.xlu0 %v1192
        %v1194 = vpop.xlane.xlu0 %1193
        %v1195 = vsel %vm1143, %v1179, 0.0
        %1196 = vadd.xlane.f32.xlu0 %v1195
        %v1197 = vpop.xlane.xlu0 %1196
        %v1198 = vsel %vm1143, %v1181, 0.0
        %1199 = vadd.xlane.f32.xlu0 %v1198
        %v1200 = vpop.xlane.xlu0 %1199
        %v1201 = vsel %vm1143, %v1183, 0.0
        %1202 = vadd.xlane.f32.xlu0 %v1201
        %v1203 = vpop.xlane.xlu0 %1202
        %v1204 = vsel %vm1143, %v1185, 0.0
        %1205 = vadd.xlane.f32.xlu0 %v1204
        %v1206 = vpop.xlane.xlu0 %1205
        %v1207 = vsel %vm1143, %v1187, 0.0
        %1208 = vadd.xlane.f32.xlu0 %v1207
        %v1209 = vpop.xlane.xlu0 %1208
        %v1210 = vsel %vm1143, %v1189, 0.0
        %1211 = vadd.xlane.f32.xlu0 %v1210
        %v1212 = vpop.xlane.xlu0 %1211
        %v1213 = vsel %vm1143, %v1191, 0.0
        %1214 = vadd.xlane.f32.xlu0 %v1213
        %v1215 = vpop.xlane.xlu0 %1214
        %v1216 = vrcp.pop %v1194
        %v1217 = vrcp.pop %v1197
        %v1218 = vrcp.pop %v1200
        %v1219 = vrcp.pop %v1203
        %v1220 = vrcp.pop %v1206
        %v1221 = vrcp.pop %v1209
        %v1222 = vrcp.pop %v1212
        %v1223 = vrcp.pop %v1215
        %v1224 = vmul.f32 %v1177, %v1216
        %v1225 = vmul.f32 %v1179, %v1217
        %v1226 = vmul.f32 %v1181, %v1218
        %v1227 = vmul.f32 %v1183, %v1219
        %v1228 = vmul.f32 %v1185, %v1220
        %v1229 = vmul.f32 %v1187, %v1221
        %v1230 = vmul.f32 %v1189, %v1222
        %v1231 = vmul.f32 %v1191, %v1223
        %v1232 = vpack.c.bf16 %v1225, %v1224
        %v1233 = vpack.c.bf16 %v1227, %v1226
        %v1234 = vpack.c.bf16 %v1229, %v1228
        %v1235 = vpack.c.bf16 %v1231, %v1230
        %v1237 = vsel %vm1143, %v1232, 0
        %1239 = vmatprep.subr.bf16.mxu0 0
        %1240 = vmatpush1.bf16.msra.mxu0 %v943
        %1241 = vmatprep.subr.bf16.mxu0 0
        %1242 = vmatpush1.bf16.msra.mxu0 0
        %1243 = vmatprep.subr.bf16.mxu0 0
        %1244 = vmatpush1.bf16.msra.mxu0 0
        %1245 = vmatprep.subr.bf16.mxu0 0
        %1246 = vmatpush1.bf16.msra.mxu0 0
        %1247 = vmatprep.subr.bf16.mxu0 0
        %1248 = vmatpush1.bf16.msra.mxu0 0
        %1249 = vmatprep.subr.bf16.mxu0 0
        %1250 = vmatpush1.bf16.msra.mxu0 0
        %1251 = vmatprep.subr.bf16.mxu0 0
        %1252 = vmatpush1.bf16.msra.mxu0 0
        %1253 = vmatprep.subr.bf16.mxu0 0
        %1254 = vmatpush1.bf16.msra.mxu0 0
        %1255 = vmatprep.subr.bf16.mxu0 0
        %1256 = vmatpush1.bf16.msra.mxu0 0
        %1257 = vmatprep.subr.bf16.mxu0 0
        %1258 = vmatpush1.bf16.msra.mxu0 0
        %1259 = vmatprep.subr.bf16.mxu0 0
        %1260 = vmatpush1.bf16.msra.mxu0 0
        %1261 = vmatprep.subr.bf16.mxu0 0
        %1262 = vmatpush1.bf16.msra.mxu0 0
        %1263 = vmatprep.subr.bf16.mxu0 0
        %1264 = vmatpush1.bf16.msra.mxu0 0
        %1265 = vmatprep.subr.bf16.mxu0 0
        %1266 = vmatpush1.bf16.msra.mxu0 0
        %1267 = vmatprep.subr.bf16.mxu0 0
        %1268 = vmatpush1.bf16.msra.mxu0 0
        %1269 = vmatprep.subr.bf16.mxu0 0
        %1270 = vmatpush1.bf16.msra.mxu0 0
        %1271 = vmatprep.mubr.bf16.mxu0 0
        %1272 = vmatmul.mubr.bf16.gmra.mrb[0].mxu0 %v1237
        %v1273 = vpop.f32.mrb[0].mxu0
        %v1274 = vadd.f32 0.0, %v1273
        %v1275 = vpop.f32.mrb[0].mxu0
        %v1276 = vpop.f32.mrb[0].mxu0
        %v1277 = vadd.f32 0.0, %v1276
        %v1278 = vpop.f32.mrb[0].mxu0
        %1279 = vdwg.mxu0
        %v1281 = vsel %vm1143, %v1233, 0
        %1283 = vmatprep.subr.bf16.mxu0 0
        %1284 = vmatpush1.bf16.msra.mxu0 %v946
        %1285 = vmatprep.subr.bf16.mxu0 0
        %1286 = vmatpush1.bf16.msra.mxu0 0
        %1287 = vmatprep.subr.bf16.mxu0 0
        %1288 = vmatpush1.bf16.msra.mxu0 0
        %1289 = vmatprep.subr.bf16.mxu0 0
        %1290 = vmatpush1.bf16.msra.mxu0 0
        %1291 = vmatprep.subr.bf16.mxu0 0
        %1292 = vmatpush1.bf16.msra.mxu0 0
        %1293 = vmatprep.subr.bf16.mxu0 0
        %1294 = vmatpush1.bf16.msra.mxu0 0
        %1295 = vmatprep.subr.bf16.mxu0 0
        %1296 = vmatpush1.bf16.msra.mxu0 0
        %1297 = vmatprep.subr.bf16.mxu0 0
        %1298 = vmatpush1.bf16.msra.mxu0 0
        %1299 = vmatprep.subr.bf16.mxu0 0
        %1300 = vmatpush1.bf16.msra.mxu0 0
        %1301 = vmatprep.subr.bf16.mxu0 0
        %1302 = vmatpush1.bf16.msra.mxu0 0
        %1303 = vmatprep.subr.bf16.mxu0 0
        %1304 = vmatpush1.bf16.msra.mxu0 0
        %1305 = vmatprep.subr.bf16.mxu0 0
        %1306 = vmatpush1.bf16.msra.mxu0 0
        %1307 = vmatprep.subr.bf16.mxu0 0
        %1308 = vmatpush1.bf16.msra.mxu0 0
        %1309 = vmatprep.subr.bf16.mxu0 0
        %1310 = vmatpush1.bf16.msra.mxu0 0
        %1311 = vmatprep.subr.bf16.mxu0 0
        %1312 = vmatpush1.bf16.msra.mxu0 0
        %1313 = vmatprep.subr.bf16.mxu0 0
        %1314 = vmatpush1.bf16.msra.mxu0 0
        %1315 = vmatprep.mubr.bf16.mxu0 0
        %1316 = vmatmul.mubr.bf16.gmra.mrb[0].mxu0 %v1281
        %v1317 = vpop.f32.mrb[0].mxu0
        %v1318 = vadd.f32 0.0, %v1317
        %v1319 = vpop.f32.mrb[0].mxu0
        %v1320 = vpop.f32.mrb[0].mxu0
        %v1321 = vadd.f32 0.0, %v1320
        %v1322 = vpop.f32.mrb[0].mxu0
        %1323 = vdwg.mxu0
        %v1325 = vsel %vm1143, %v1234, 0
        %1327 = vmatprep.subr.bf16.mxu0 0
        %1328 = vmatpush1.bf16.msra.mxu0 %v949
        %1329 = vmatprep.subr.bf16.mxu0 0
        %1330 = vmatpush1.bf16.msra.mxu0 0
        %1331 = vmatprep.subr.bf16.mxu0 0
        %1332 = vmatpush1.bf16.msra.mxu0 0
        %1333 = vmatprep.subr.bf16.mxu0 0
        %1334 = vmatpush1.bf16.msra.mxu0 0
        %1335 = vmatprep.subr.bf16.mxu0 0
        %1336 = vmatpush1.bf16.msra.mxu0 0
        %1337 = vmatprep.subr.bf16.mxu0 0
        %1338 = vmatpush1.bf16.msra.mxu0 0
        %1339 = vmatprep.subr.bf16.mxu0 0
        %1340 = vmatpush1.bf16.msra.mxu0 0
        %1341 = vmatprep.subr.bf16.mxu0 0
        %1342 = vmatpush1.bf16.msra.mxu0 0
        %1343 = vmatprep.subr.bf16.mxu0 0
        %1344 = vmatpush1.bf16.msra.mxu0 0
        %1345 = vmatprep.subr.bf16.mxu0 0
        %1346 = vmatpush1.bf16.msra.mxu0 0
        %1347 = vmatprep.subr.bf16.mxu0 0
        %1348 = vmatpush1.bf16.msra.mxu0 0
        %1349 = vmatprep.subr.bf16.mxu0 0
        %1350 = vmatpush1.bf16.msra.mxu0 0
        %1351 = vmatprep.subr.bf16.mxu0 0
        %1352 = vmatpush1.bf16.msra.mxu0 0
        %1353 = vmatprep.subr.bf16.mxu0 0
        %1354 = vmatpush1.bf16.msra.mxu0 0
        %1355 = vmatprep.subr.bf16.mxu0 0
        %1356 = vmatpush1.bf16.msra.mxu0 0
        %1357 = vmatprep.subr.bf16.mxu0 0
        %1358 = vmatpush1.bf16.msra.mxu0 0
        %1359 = vmatprep.mubr.bf16.mxu0 0
        %1360 = vmatmul.mubr.bf16.gmra.mrb[0].mxu0 %v1325
        %v1361 = vpop.f32.mrb[0].mxu0
        %v1362 = vadd.f32 0.0, %v1361
        %v1363 = vpop.f32.mrb[0].mxu0
        %v1364 = vpop.f32.mrb[0].mxu0
        %v1365 = vadd.f32 0.0, %v1364
        %v1366 = vpop.f32.mrb[0].mxu0
        %1367 = vdwg.mxu0
        %v1369 = vsel %vm1143, %v1235, 0
        %1371 = vmatprep.subr.bf16.mxu0 0
        %1372 = vmatpush1.bf16.msra.mxu0 %v952
        %1373 = vmatprep.subr.bf16.mxu0 0
        %1374 = vmatpush1.bf16.msra.mxu0 0
        %1375 = vmatprep.subr.bf16.mxu0 0
        %1376 = vmatpush1.bf16.msra.mxu0 0
        %1377 = vmatprep.subr.bf16.mxu0 0
        %1378 = vmatpush1.bf16.msra.mxu0 0
        %1379 = vmatprep.subr.bf16.mxu0 0
        %1380 = vmatpush1.bf16.msra.mxu0 0
        %1381 = vmatprep.subr.bf16.mxu0 0
        %1382 = vmatpush1.bf16.msra.mxu0 0
        %1383 = vmatprep.subr.bf16.mxu0 0
        %1384 = vmatpush1.bf16.msra.mxu0 0
        %1385 = vmatprep.subr.bf16.mxu0 0
        %1386 = vmatpush1.bf16.msra.mxu0 0
        %1387 = vmatprep.subr.bf16.mxu0 0
        %1388 = vmatpush1.bf16.msra.mxu0 0
        %1389 = vmatprep.subr.bf16.mxu0 0
        %1390 = vmatpush1.bf16.msra.mxu0 0
        %1391 = vmatprep.subr.bf16.mxu0 0
        %1392 = vmatpush1.bf16.msra.mxu0 0
        %1393 = vmatprep.subr.bf16.mxu0 0
        %1394 = vmatpush1.bf16.msra.mxu0 0
        %1395 = vmatprep.subr.bf16.mxu0 0
        %1396 = vmatpush1.bf16.msra.mxu0 0
        %1397 = vmatprep.subr.bf16.mxu0 0
        %1398 = vmatpush1.bf16.msra.mxu0 0
        %1399 = vmatprep.subr.bf16.mxu0 0
        %1400 = vmatpush1.bf16.msra.mxu0 0
        %1401 = vmatprep.subr.bf16.mxu0 0
        %1402 = vmatpush1.bf16.msra.mxu0 0
        %1403 = vmatprep.mubr.bf16.mxu0 0
        %1404 = vmatmul.mubr.bf16.gmra.mrb[0].mxu0 %v1369
        %v1405 = vpop.f32.mrb[0].mxu0
        %v1406 = vadd.f32 0.0, %v1405
        %v1407 = vpop.f32.mrb[0].mxu0
        %v1408 = vpop.f32.mrb[0].mxu0
        %v1409 = vadd.f32 0.0, %v1408
        %v1410 = vpop.f32.mrb[0].mxu0
        %1411 = vdwg.mxu0
        %1414 = vrot.lane.b32.xlu0 %v1318, 32
        %v1415 = vpop.permute.xlu0 %1414
        %1416 = vrot.lane.b32.xlu0 %v1321, 32
        %v1417 = vpop.permute.xlu0 %1416
        %1422 = vrot.lane.b32.xlu0 %v1362, 64
        %v1423 = vpop.permute.xlu0 %1422
        %1424 = vrot.lane.b32.xlu0 %v1365, 64
        %v1425 = vpop.permute.xlu0 %1424
        %1430 = vrot.lane.b32.xlu0 %v1406, 96
        %v1431 = vpop.permute.xlu0 %1430
        %1432 = vrot.lane.b32.xlu0 %v1409, 96
        %v1433 = vpop.permute.xlu0 %1432
        %v1436 = vsel %vm954, %v1274, %v1415
        %v1437 = vsel %vm954, %v1277, %v1417
        %vm1438 = vcmask 523264
        %v1439 = vsel %vm1438, %v1436, %v1423
        %v1440 = vsel %vm1438, %v1437, %v1425
        %vm1441 = vcmask 785408
        %v1442 = vsel %vm1441, %v1439, %v1431
        %v1443 = vsel %vm1441, %v1440, %v1433
        %v1444 = vpack.c.bf16 %v1443, %v1442
        %v1445 = vld [vmem:[#allocation11] sm:$0xf]
        %v1446 = vld [vmem:[#allocation11 + $0x4] sm:$0xf]
        %v1447 = vld [vmem:[#allocation11 + $0x8] sm:$0xf]
        %v1448 = vld [vmem:[#allocation11 + $0xc] sm:$0xf]
        %v1449 = vld [vmem:[#allocation11 + $0x10] sm:$0xf]
        %v1450 = vld [vmem:[#allocation11 + $0x14] sm:$0xf]
        %v1451 = vld [vmem:[#allocation11 + $0x18] sm:$0xf]
        %v1452 = vld [vmem:[#allocation11 + $0x1c] sm:$0xf]
        %v1453 = vld [vmem:[#allocation11 + $0x20] sm:$0xf]
        %v1454 = vld [vmem:[#allocation11 + $0x24] sm:$0xf]
        %v1455 = vld [vmem:[#allocation11 + $0x28] sm:$0xf]
        %v1456 = vld [vmem:[#allocation11 + $0x2c] sm:$0xf]
        %v1457 = vld [vmem:[#allocation11 + $0x30] sm:$0xf]
        %v1458 = vld [vmem:[#allocation11 + $0x34] sm:$0xf]
        %v1459 = vld [vmem:[#allocation11 + $0x38] sm:$0xf]
        %v1460 = vld [vmem:[#allocation11 + $0x3c] sm:$0xf]
        %v1461 = vld [vmem:[#allocation13] sm:$0x1]
        %v1463 = vlaneseq
        %v1464 = vshrl.u32 %v1463, 7
        %v1465 = vsub.s32 0, %v1464
        %v1466 = vrot.slane %v1461, %v1465
        %v1484 = vunpack.c.l.b16 %v1445
        %v1485 = vunpack.c.l.b16 %v1446
        %v1486 = vunpack.c.l.b16 %v1447
        %v1487 = vunpack.c.l.b16 %v1448
        %v1488 = vunpack.c.l.b16 %v1449
        %v1489 = vunpack.c.l.b16 %v1450
        %v1490 = vunpack.c.l.b16 %v1451
        %v1491 = vunpack.c.l.b16 %v1452
        %v1492 = vunpack.c.l.b16 %v1453
        %v1493 = vunpack.c.l.b16 %v1454
        %v1494 = vunpack.c.l.b16 %v1455
        %v1495 = vunpack.c.l.b16 %v1456
        %v1496 = vunpack.c.l.b16 %v1457
        %v1497 = vunpack.c.l.b16 %v1458
        %v1498 = vunpack.c.l.b16 %v1459
        %v1499 = vunpack.c.l.b16 %v1460
        %v1500 = vpack.c.b16 %v1485, %v1484
        %v1501 = vpack.c.b16 %v1487, %v1486
        %v1502 = vpack.c.b16 %v1489, %v1488
        %v1503 = vpack.c.b16 %v1491, %v1490
        %v1504 = vpack.c.b16 %v1493, %v1492
        %v1505 = vpack.c.b16 %v1495, %v1494
        %v1506 = vpack.c.b16 %v1497, %v1496
        %v1507 = vpack.c.b16 %v1499, %v1498
        %1516 = vmatprep.subr.bf16.mxu0 0
        %1517 = vmatpush1.bf16.msra.mxu0 %v1500
        %1518 = vmatprep.subr.bf16.mxu0 0
        %1519 = vmatpush1.bf16.msra.mxu0 %v1501
        %1520 = vmatprep.subr.bf16.mxu0 0
        %1521 = vmatpush1.bf16.msra.mxu0 %v1502
        %1522 = vmatprep.subr.bf16.mxu0 0
        %1523 = vmatpush1.bf16.msra.mxu0 %v1503
        %1524 = vmatprep.subr.bf16.mxu0 0
        %1525 = vmatpush1.bf16.msra.mxu0 %v1504
        %1526 = vmatprep.subr.bf16.mxu0 0
        %1527 = vmatpush1.bf16.msra.mxu0 %v1505
        %1528 = vmatprep.subr.bf16.mxu0 0
        %1529 = vmatpush1.bf16.msra.mxu0 %v1506
        %1530 = vmatprep.subr.bf16.mxu0 0
        %1531 = vmatpush1.bf16.msra.mxu0 %v1507
        %1532 = vmatprep.subr.bf16.mxu0 0
        %1533 = vmatpush1.bf16.msra.mxu0 0
        %1534 = vmatprep.subr.bf16.mxu0 0
        %1535 = vmatpush1.bf16.msra.mxu0 0
        %1536 = vmatprep.subr.bf16.mxu0 0
        %1537 = vmatpush1.bf16.msra.mxu0 0
        %1538 = vmatprep.subr.bf16.mxu0 0
        %1539 = vmatpush1.bf16.msra.mxu0 0
        %1540 = vmatprep.subr.bf16.mxu0 0
        %1541 = vmatpush1.bf16.msra.mxu0 0
        %1542 = vmatprep.subr.bf16.mxu0 0
        %1543 = vmatpush1.bf16.msra.mxu0 0
        %1544 = vmatprep.subr.bf16.mxu0 0
        %1545 = vmatpush1.bf16.msra.mxu0 0
        %1546 = vmatprep.subr.bf16.mxu0 0
        %1547 = vmatpush1.bf16.msra.mxu0 0
        %1548 = vmatprep.mubr.bf16.mxu0 0
        %1549 = vmatmul.mubr.bf16.gmra.mrb[0].mxu0 %v1444
        %v1550 = vpop.f32.mrb[0].mxu0
        %v1551 = vadd.f32 %v1466, %v1550
        %v1552 = vpop.f32.mrb[0].mxu0
        %v1553 = vpop.f32.mrb[0].mxu0
        %v1554 = vadd.f32 %v1466, %v1553
        %v1555 = vpop.f32.mrb[0].mxu0
        %1556 = vdwg.mxu0
        %v1557 = vadd.f32 %v1551, %v618
        %v1558 = vadd.f32 %v1554, %v619
        %v1559 = vld [vmem:[#allocation14] sm:$0x1]
        %v1560 = vld [vmem:[#allocation16] sm:$0x1]
        %1561 = vadd.xlane.f32.xlu0 %v1557
        %v1562 = vpop.xlane.xlu0 %1561
        %1563 = vadd.xlane.f32.xlu0 %v1558
        %v1564 = vpop.xlane.xlu0 %1563
        %v1565 = vmul.f32 %v1562, %v626
        %v1566 = vmul.f32 %v1564, %v626
        %v1567 = vmul.f32 %v1557, %v1557
        %v1568 = vmul.f32 %v1558, %v1558
        %1569 = vadd.xlane.f32.xlu0 %v1567
        %v1570 = vpop.xlane.xlu0 %1569
        %1571 = vadd.xlane.f32.xlu0 %v1568
        %v1572 = vpop.xlane.xlu0 %1571
        %v1573 = vmul.f32 %v1570, %v626
        %v1574 = vmul.f32 %v1572, %v626
        %v1575 = vmul.f32 %v1565, %v1565
        %v1576 = vmul.f32 %v1566, %v1566
        %v1577 = vsub.f32 %v1573, %v1575
        %v1578 = vsub.f32 %v1574, %v1576
        %v1579 = vsub.f32 %v1557, %v1565
        %v1580 = vsub.f32 %v1558, %v1566
        %v1581 = vadd.f32 %v1577, 1e-05
        %v1582 = vadd.f32 %v1578, 1e-05
        %v1583 = vrsqrt.pop %v1581
        %v1584 = vrsqrt.pop %v1582
        %v1585 = vmul.f32 %v1579, %v1583
        %v1586 = vmul.f32 %v1580, %v1584
        %v1588 = vlaneseq
        %v1589 = vshrl.u32 %v1588, 7
        %v1590 = vsub.s32 0, %v1589
        %v1591 = vrot.slane %v1559, %v1590
        %v1593 = vmul.f32 %v1585, %v1591
        %v1594 = vmul.f32 %v1586, %v1591
        %v1596 = vlaneseq
        %v1597 = vshrl.u32 %v1596, 7
        %v1598 = vsub.s32 0, %v1597
        %v1599 = vrot.slane %v1560, %v1598
        %v1601 = vadd.f32 %v1593, %v1599
        %v1602 = vadd.f32 %v1594, %v1599
        %v1603 = vpack.c.bf16 %v1602, %v1601
        %v1604 = vld [vmem:[#allocation17] sm:$0xff]
        %v1605 = vld [vmem:[#allocation17 + $0x8] sm:$0xff]
        %v1606 = vld [vmem:[#allocation17 + $0x10] sm:$0xff]
        %v1607 = vld [vmem:[#allocation17 + $0x18] sm:$0xff]
        %v1608 = vld [vmem:[#allocation17 + $0x20] sm:$0xff]
        %v1609 = vld [vmem:[#allocation17 + $0x28] sm:$0xff]
        %v1610 = vld [vmem:[#allocation17 + $0x30] sm:$0xff]
        %v1611 = vld [vmem:[#allocation17 + $0x38] sm:$0xff]
        %v1612 = vld [vmem:[#allocation17 + $0x40] sm:$0xff]
        %v1613 = vld [vmem:[#allocation17 + $0x48] sm:$0xff]
        %v1614 = vld [vmem:[#allocation17 + $0x50] sm:$0xff]
        %v1615 = vld [vmem:[#allocation17 + $0x58] sm:$0xff]
        %v1616 = vld [vmem:[#allocation17 + $0x60] sm:$0xff]
        %v1617 = vld [vmem:[#allocation17 + $0x68] sm:$0xff]
        %v1618 = vld [vmem:[#allocation17 + $0x70] sm:$0xff]
        %v1619 = vld [vmem:[#allocation17 + $0x78] sm:$0xff]
        %v1620 = vld [vmem:[#allocation19] sm:$0x3]
        %v1622 = vlaneseq
        %v1623 = vshrl.u32 %v1622, 7
        %v1624 = vsub.s32 0, %v1623
        %v1625 = vrot.slane %v1620, %v1624
        %v1626 = vlaneseq
        %v1627 = vshrl.u32 %v1626, 7
        %v1628 = vsub.s32 1, %v1627
        %v1629 = vrot.slane %v1620, %v1628
        %v1648 = vunpack.c.l.b16 %v1604
        %v1649 = vunpack.c.h.b16 %v1604
        %v1650 = vunpack.c.l.b16 %v1605
        %v1651 = vunpack.c.h.b16 %v1605
        %v1652 = vunpack.c.l.b16 %v1606
        %v1653 = vunpack.c.h.b16 %v1606
        %v1654 = vunpack.c.l.b16 %v1607
        %v1655 = vunpack.c.h.b16 %v1607
        %v1656 = vunpack.c.l.b16 %v1608
        %v1657 = vunpack.c.h.b16 %v1608
        %v1658 = vunpack.c.l.b16 %v1609
        %v1659 = vunpack.c.h.b16 %v1609
        %v1660 = vunpack.c.l.b16 %v1610
        %v1661 = vunpack.c.h.b16 %v1610
        %v1662 = vunpack.c.l.b16 %v1611
        %v1663 = vunpack.c.h.b16 %v1611
        %v1664 = vunpack.c.l.b16 %v1612
        %v1665 = vunpack.c.h.b16 %v1612
        %v1666 = vunpack.c.l.b16 %v1613
        %v1667 = vunpack.c.h.b16 %v1613
        %v1668 = vunpack.c.l.b16 %v1614
        %v1669 = vunpack.c.h.b16 %v1614
        %v1670 = vunpack.c.l.b16 %v1615
        %v1671 = vunpack.c.h.b16 %v1615
        %v1672 = vunpack.c.l.b16 %v1616
        %v1673 = vunpack.c.h.b16 %v1616
        %v1674 = vunpack.c.l.b16 %v1617
        %v1675 = vunpack.c.h.b16 %v1617
        %v1676 = vunpack.c.l.b16 %v1618
        %v1677 = vunpack.c.h.b16 %v1618
        %v1678 = vunpack.c.l.b16 %v1619
        %v1679 = vunpack.c.h.b16 %v1619
        %v1680 = vpack.c.b16 %v1650, %v1648
        %v1681 = vpack.c.b16 %v1651, %v1649
        %v1682 = vpack.c.b16 %v1654, %v1652
        %v1683 = vpack.c.b16 %v1655, %v1653
        %v1684 = vpack.c.b16 %v1658, %v1656
        %v1685 = vpack.c.b16 %v1659, %v1657
        %v1686 = vpack.c.b16 %v1662, %v1660
        %v1687 = vpack.c.b16 %v1663, %v1661
        %v1688 = vpack.c.b16 %v1666, %v1664
        %v1689 = vpack.c.b16 %v1667, %v1665
        %v1690 = vpack.c.b16 %v1670, %v1668
        %v1691 = vpack.c.b16 %v1671, %v1669
        %v1692 = vpack.c.b16 %v1674, %v1672
        %v1693 = vpack.c.b16 %v1675, %v1673
        %v1694 = vpack.c.b16 %v1678, %v1676
        %v1695 = vpack.c.b16 %v1679, %v1677
        %1712 = vmatprep.subr.bf16.mxu0 %v1681
        %1713 = vmatpush1.bf16.msra.mxu0 %v1680
        %1714 = vmatprep.subr.bf16.mxu0 %v1683
        %1715 = vmatpush1.bf16.msra.mxu0 %v1682
        %1716 = vmatprep.subr.bf16.mxu0 %v1685
        %1717 = vmatpush1.bf16.msra.mxu0 %v1684
        %1718 = vmatprep.subr.bf16.mxu0 %v1687
        %1719 = vmatpush1.bf16.msra.mxu0 %v1686
        %1720 = vmatprep.subr.bf16.mxu0 %v1689
        %1721 = vmatpush1.bf16.msra.mxu0 %v1688
        %1722 = vmatprep.subr.bf16.mxu0 %v1691
        %1723 = vmatpush1.bf16.msra.mxu0 %v1690
        %1724 = vmatprep.subr.bf16.mxu0 %v1693
        %1725 = vmatpush1.bf16.msra.mxu0 %v1692
        %1726 = vmatprep.subr.bf16.mxu0 %v1695
        %1727 = vmatpush1.bf16.msra.mxu0 %v1694
        %1728 = vmatprep.subr.bf16.mxu0 0
        %1729 = vmatpush1.bf16.msra.mxu0 0
        %1730 = vmatprep.subr.bf16.mxu0 0
        %1731 = vmatpush1.bf16.msra.mxu0 0
        %1732 = vmatprep.subr.bf16.mxu0 0
        %1733 = vmatpush1.bf16.msra.mxu0 0
        %1734 = vmatprep.subr.bf16.mxu0 0
        %1735 = vmatpush1.bf16.msra.mxu0 0
        %1736 = vmatprep.subr.bf16.mxu0 0
        %1737 = vmatpush1.bf16.msra.mxu0 0
        %1738 = vmatprep.subr.bf16.mxu0 0
        %1739 = vmatpush1.bf16.msra.mxu0 0
        %1740 = vmatprep.subr.bf16.mxu0 0
        %1741 = vmatpush1.bf16.msra.mxu0 0
        %1742 = vmatprep.subr.bf16.mxu0 0
        %1743 = vmatpush1.bf16.msra.mxu0 0
        %1744 = vmatprep.mubr.bf16.mxu0 0
        %1745 = vmatmul.mubr.bf16.gmra.mrb[0].mxu0 %v1603
        %v1746 = vpop.f32.mrb[0].mxu0
        %v1747 = vadd.f32 %v1625, %v1746
        %v1748 = vpop.f32.mrb[0].mxu0
        %v1749 = vadd.f32 %v1629, %v1748
        %v1750 = vpop.f32.mrb[0].mxu0
        %v1751 = vadd.f32 %v1625, %v1750
        %v1752 = vpop.f32.mrb[0].mxu0
        %v1753 = vadd.f32 %v1629, %v1752
        %1754 = vdwg.mxu0
        %v1755 = vmax.f32 %v1747, 0.0
        %v1756 = vmax.f32 %v1749, 0.0
        %v1757 = vmax.f32 %v1751, 0.0
        %v1758 = vmax.f32 %v1753, 0.0
        %v1759 = vpack.c.bf16 %v1757, %v1755
        %v1760 = vpack.c.bf16 %v1758, %v1756
        %v1761 = vld [vmem:[#allocation20] sm:$0xf]
        %v1762 = vld [vmem:[#allocation20 + $0x4] sm:$0xf]
        %v1763 = vld [vmem:[#allocation20 + $0x8] sm:$0xf]
        %v1764 = vld [vmem:[#allocation20 + $0xc] sm:$0xf]
        %v1765 = vld [vmem:[#allocation20 + $0x10] sm:$0xf]
        %v1766 = vld [vmem:[#allocation20 + $0x14] sm:$0xf]
        %v1767 = vld [vmem:[#allocation20 + $0x18] sm:$0xf]
        %v1768 = vld [vmem:[#allocation20 + $0x1c] sm:$0xf]
        %v1769 = vld [vmem:[#allocation20 + $0x20] sm:$0xf]
        %v1770 = vld [vmem:[#allocation20 + $0x24] sm:$0xf]
        %v1771 = vld [vmem:[#allocation20 + $0x28] sm:$0xf]
        %v1772 = vld [vmem:[#allocation20 + $0x2c] sm:$0xf]
        %v1773 = vld [vmem:[#allocation20 + $0x30] sm:$0xf]
        %v1774 = vld [vmem:[#allocation20 + $0x34] sm:$0xf]
        %v1775 = vld [vmem:[#allocation20 + $0x38] sm:$0xf]
        %v1776 = vld [vmem:[#allocation20 + $0x3c] sm:$0xf]
        %v1777 = vld [vmem:[#allocation20 + $0x40] sm:$0xf]
        %v1778 = vld [vmem:[#allocation20 + $0x44] sm:$0xf]
        %v1779 = vld [vmem:[#allocation20 + $0x48] sm:$0xf]
        %v1780 = vld [vmem:[#allocation20 + $0x4c] sm:$0xf]
        %v1781 = vld [vmem:[#allocation20 + $0x50] sm:$0xf]
        %v1782 = vld [vmem:[#allocation20 + $0x54] sm:$0xf]
        %v1783 = vld [vmem:[#allocation20 + $0x58] sm:$0xf]
        %v1784 = vld [vmem:[#allocation20 + $0x5c] sm:$0xf]
        %v1785 = vld [vmem:[#allocation20 + $0x60] sm:$0xf]
        %v1786 = vld [vmem:[#allocation20 + $0x64] sm:$0xf]
        %v1787 = vld [vmem:[#allocation20 + $0x68] sm:$0xf]
        %v1788 = vld [vmem:[#allocation20 + $0x6c] sm:$0xf]
        %v1789 = vld [vmem:[#allocation20 + $0x70] sm:$0xf]
        %v1790 = vld [vmem:[#allocation20 + $0x74] sm:$0xf]
        %v1791 = vld [vmem:[#allocation20 + $0x78] sm:$0xf]
        %v1792 = vld [vmem:[#allocation20 + $0x7c] sm:$0xf]
        %v1793 = vld [vmem:[#allocation22] sm:$0x1]
        %v1795 = vlaneseq
        %v1796 = vshrl.u32 %v1795, 7
        %v1797 = vsub.s32 0, %v1796
        %v1798 = vrot.slane %v1793, %v1797
        %v1832 = vunpack.c.l.b16 %v1761
        %v1833 = vunpack.c.l.b16 %v1762
        %v1834 = vunpack.c.l.b16 %v1763
        %v1835 = vunpack.c.l.b16 %v1764
        %v1836 = vunpack.c.l.b16 %v1765
        %v1837 = vunpack.c.l.b16 %v1766
        %v1838 = vunpack.c.l.b16 %v1767
        %v1839 = vunpack.c.l.b16 %v1768
        %v1840 = vunpack.c.l.b16 %v1769
        %v1841 = vunpack.c.l.b16 %v1770
        %v1842 = vunpack.c.l.b16 %v1771
        %v1843 = vunpack.c.l.b16 %v1772
        %v1844 = vunpack.c.l.b16 %v1773
        %v1845 = vunpack.c.l.b16 %v1774
        %v1846 = vunpack.c.l.b16 %v1775
        %v1847 = vunpack.c.l.b16 %v1776
        %v1848 = vunpack.c.l.b16 %v1777
        %v1849 = vunpack.c.l.b16 %v1778
        %v1850 = vunpack.c.l.b16 %v1779
        %v1851 = vunpack.c.l.b16 %v1780
        %v1852 = vunpack.c.l.b16 %v1781
        %v1853 = vunpack.c.l.b16 %v1782
        %v1854 = vunpack.c.l.b16 %v1783
        %v1855 = vunpack.c.l.b16 %v1784
        %v1856 = vunpack.c.l.b16 %v1785
        %v1857 = vunpack.c.l.b16 %v1786
        %v1858 = vunpack.c.l.b16 %v1787
        %v1859 = vunpack.c.l.b16 %v1788
        %v1860 = vunpack.c.l.b16 %v1789
        %v1861 = vunpack.c.l.b16 %v1790
        %v1862 = vunpack.c.l.b16 %v1791
        %v1863 = vunpack.c.l.b16 %v1792
        %v1864 = vpack.c.b16 %v1833, %v1832
        %v1865 = vpack.c.b16 %v1835, %v1834
        %v1866 = vpack.c.b16 %v1837, %v1836
        %v1867 = vpack.c.b16 %v1839, %v1838
        %v1868 = vpack.c.b16 %v1841, %v1840
        %v1869 = vpack.c.b16 %v1843, %v1842
        %v1870 = vpack.c.b16 %v1845, %v1844
        %v1871 = vpack.c.b16 %v1847, %v1846
        %v1872 = vpack.c.b16 %v1849, %v1848
        %v1873 = vpack.c.b16 %v1851, %v1850
        %v1874 = vpack.c.b16 %v1853, %v1852
        %v1875 = vpack.c.b16 %v1855, %v1854
        %v1876 = vpack.c.b16 %v1857, %v1856
        %v1877 = vpack.c.b16 %v1859, %v1858
        %v1878 = vpack.c.b16 %v1861, %v1860
        %v1879 = vpack.c.b16 %v1863, %v1862
        %1896 = vmatprep.subr.bf16.mxu0 0
        %1897 = vmatpush1.bf16.msra.mxu0 %v1864
        %1898 = vmatprep.subr.bf16.mxu0 0
        %1899 = vmatpush1.bf16.msra.mxu0 %v1865
        %1900 = vmatprep.subr.bf16.mxu0 0
        %1901 = vmatpush1.bf16.msra.mxu0 %v1866
        %1902 = vmatprep.subr.bf16.mxu0 0
        %1903 = vmatpush1.bf16.msra.mxu0 %v1867
        %1904 = vmatprep.subr.bf16.mxu0 0
        %1905 = vmatpush1.bf16.msra.mxu0 %v1868
        %1906 = vmatprep.subr.bf16.mxu0 0
        %1907 = vmatpush1.bf16.msra.mxu0 %v1869
        %1908 = vmatprep.subr.bf16.mxu0 0
        %1909 = vmatpush1.bf16.msra.mxu0 %v1870
        %1910 = vmatprep.subr.bf16.mxu0 0
        %1911 = vmatpush1.bf16.msra.mxu0 %v1871
        %1912 = vmatprep.subr.bf16.mxu0 0
        %1913 = vmatpush1.bf16.msra.mxu0 %v1872
        %1914 = vmatprep.subr.bf16.mxu0 0
        %1915 = vmatpush1.bf16.msra.mxu0 %v1873
        %1916 = vmatprep.subr.bf16.mxu0 0
        %1917 = vmatpush1.bf16.msra.mxu0 %v1874
        %1918 = vmatprep.subr.bf16.mxu0 0
        %1919 = vmatpush1.bf16.msra.mxu0 %v1875
        %1920 = vmatprep.subr.bf16.mxu0 0
        %1921 = vmatpush1.bf16.msra.mxu0 %v1876
        %1922 = vmatprep.subr.bf16.mxu0 0
        %1923 = vmatpush1.bf16.msra.mxu0 %v1877
        %1924 = vmatprep.subr.bf16.mxu0 0
        %1925 = vmatpush1.bf16.msra.mxu0 %v1878
        %1926 = vmatprep.subr.bf16.mxu0 0
        %1927 = vmatpush1.bf16.msra.mxu0 %v1879
        %1928 = vmatprep.mubr.bf16.mxu0 %v1760
        %1929 = vmatmul.mubr.bf16.gmra.mrb[0].mxu0 %v1759
        %v1930 = vpop.f32.mrb[0].mxu0
        %v1931 = vadd.f32 %v1798, %v1930
        %v1932 = vpop.f32.mrb[0].mxu0
        %v1933 = vpop.f32.mrb[0].mxu0
        %v1934 = vadd.f32 %v1798, %v1933
        %v1935 = vpop.f32.mrb[0].mxu0
        %1936 = vdwg.mxu0
        %v1937 = vadd.f32 %v1931, %v1557
        %v1938 = vadd.f32 %v1934, %v1558
        %1939 = vst [vmem:[%s616] sm:$0xff] %v1937
        %1940 = vst [vmem:[%s616 + $0x8] sm:$0xff] %v1938
        %s1941 = sand.u32 %s322, 1
        %s1942 = scalar_lea.sflag [#allocation4], %s1941
        %s1943 = sand.u32 %s322, 1
        %s1944 = smul.addr %s1943, 16
        %s1945 = scalar_lea.vmem [#allocation23], %s1944
        // Predicated region
        $region125: #{tpu_custom_call.1} parent=71 // pred_check
          %p1946 = pneg %p332
        $region126: #{tpu_custom_call.1} parent=71 // pred_check_branch
          %1948 = sbr.rel (%p1946) target = $region128
        $region127: #{tpu_custom_call.1} parent=71 // pred_region
          %s1950 = ssub.s32 256, 256
          %1951 = vsyncadd %s1942, %s1950
          %s1952 = smul.addr %s36, 2
          %s1953 = smul.addr %s1952, 128
          %s1954 = scalar_lea.hbm %s13, %s1953
          %s1955 = sshll.u32 %s1945, 4
          %s1956 = int_to_ptr.vmem [resolvable:$true] %s1955
          %1961 = dma.vmem_to_hbm [thread:$0]  %s1956, 256, %s1954, %s1942, 128, 128, 8
        $region128: #{tpu_custom_call.1} parent=71 // pred_fallthru
          _
      $region72: #{tpu_custom_call.1} parent=5 // pred_fallthru
        _
      %p1962 = scmp.le.s32.totalorder 2, %s31
      // Predicated region
      $region129: #{tpu_custom_call.1} parent=5 // pred_check
        %p1963 = pneg %p1962
      $region130: #{tpu_custom_call.1} parent=5 // pred_check_branch
        %1965 = sbr.rel (%p1963) target = $region132
      $region131: #{tpu_custom_call.1} parent=5 // pred_region
        %s1966 = ssub.s32 %s31, 2
        // Predicated region
        $region133: #{tpu_custom_call.1} parent=131 // pred_check
          %p1967 = pneg %p338
        $region134: #{tpu_custom_call.1} parent=131 // pred_check_branch
          %1969 = sbr.rel (%p1967) target = $region136
        $region135: #{tpu_custom_call.1} parent=131 // pred_region
          %s1970 = sand.u32 %s323, 1
          %s1971 = scalar_lea.sflag [#allocation4], %s1970
          %s1972 = sand.u32 %s323, 1
          %s1973 = smul.addr %s1972, 16
          %s1974 = scalar_lea.vmem [#allocation23], %s1973
          %1975 = dma.done %s1971, 256
        $region136: #{tpu_custom_call.1} parent=131 // pred_fallthru
          _
      $region132: #{tpu_custom_call.1} parent=5 // pred_fallthru
        _
    $region6: #{tpu_custom_call.1} parent=1 // loop_footer
      %s35 = sadd.s32 1, %s31
    $region7: #{tpu_custom_call.1} parent=1 // loop_footer_branch
      %30 = sbr.rel target = $region3
    $region8: #{tpu_custom_call.1} parent=1 // loop_exit
      _
    %1976 = vsyncpa [#allocation3], 1
    %s1977 = scalar_lea.sflag [#allocation3], 1
    %1978 = vsyncpa %s1977, 1
    %1979 = vsyncpa [#allocation6], 1
    %1980 = vsyncpa [#allocation9], 1
    %1981 = vsyncpa [#allocation12], 1
    %1982 = vsyncpa [#allocation15], 1
    %1983 = vsyncpa [#allocation18], 1
    %1984 = vsyncpa [#allocation21], 1
    %1985 = vsyncpa [#allocation4], 1
    %s1986 = scalar_lea.sflag [#allocation4], 1
    %1987 = vsyncpa %s1986, 1

</llo_original>
